<compile_context>
chip_gen: v6e
topology: v6e:2x2x1
jax: 0.10.0
libtpu: 0.0.40
codegen_flags: <defaults>
</compile_context>

<pallas_src>
import functools
import math

import jax
import jax.numpy as jnp
from jax import lax
from jax.experimental import pallas as pl
from jax.experimental.pallas import tpu as pltpu


def _round_up(n, m):
    return ((n + m - 1) // m) * m


def _vmem_capacity_bytes():
    """Physical VMEM per TensorCore (64 MiB on v7x, 128 MiB on v5e/v6e)."""
    try:
        cap = getattr(pltpu.get_tpu_info(), "vmem_capacity_bytes", None)
        if cap:
            return int(cap)
    except Exception:
        pass
    return 64 << 20   # v7x-safe fallback


def _lstm_chunk_kernel(gx_ref, w_hh_hbm, h_out_ref,
                       w_hh_sc, h_sc, c_sc, dma_sem,
                       *, seq_len, batch, mm_dtype, unroll, has_tail):
    """One grid step = TT timesteps of the LSTM recurrence.

    gx_ref   : (TT/G, G*B, 4*Hp)  precomputed x@W_ih + b; G timesteps packed
                                  per 8-sublane row group (dense VMEM / DMA).
    w_hh_hbm : (Hp, 4*Hp)         raw HBM ref, copied once into w_hh_sc.
    h_sc/c_sc: (B, Hp) f32        recurrent state, persists across grid steps.
    h_out_ref: (B, Hp) f32        lane-dense h_T, written at the last chunk.
    """
    chunk = pl.program_id(0)
    num_chunks = pl.num_programs(0)
    B = batch
    Hp = h_sc.shape[-1]
    n_groups_full, GB, _ = gx_ref.shape
    G = GB // B
    TT = n_groups_full * G

    @pl.when(chunk == 0)
    def _init():
        # One-time async weight DMA, overlapped with the h/c zero-init.
        cp = pltpu.make_async_copy(w_hh_hbm, w_hh_sc, dma_sem)
        cp.start()
        h_sc[...] = jnp.zeros_like(h_sc)
        c_sc[...] = jnp.zeros_like(c_sc)
        cp.wait()

    w_hh = w_hh_sc[...]   # loop-invariant, hoisted out of the step loop

    def cell(gx_t, h, c):
        # Only the recurrent matmul sits on the serial critical path.
        gates = gx_t + jnp.dot(h.astype(mm_dtype), w_hh,
                               preferred_element_type=jnp.float32)
        # Gate order [i, f, o, g]: one sigmoid over the contiguous 3*Hp block,
        # one tanh over the last Hp block.
        sig = jax.nn.sigmoid(gates[:, :3 * Hp])
        g_act = jnp.tanh(gates[:, 3 * Hp:])
        i_g = sig[:, 0 * Hp:1 * Hp]
        f_g = sig[:, 1 * Hp:2 * Hp]
        o_g = sig[:, 2 * Hp:3 * Hp]
        c_new = f_g * c + i_g * g_act
        h_new = o_g * jnp.tanh(c_new)
        return h_new, c_new

    def full_group(g, carry):
        h, c = carry
        slab = gx_ref[g].astype(jnp.float32)          # dynamic leading-dim index
        for j in range(G):                            # static sublane slices
            h, c = cell(slab[j * B:(j + 1) * B, :], h, c)
        return h, c

    if not has_tail:
        # TT divides T: mask-free, fully unrolled fast path on every chunk.
        h, c = lax.fori_loop(0, n_groups_full, full_group,
                             (h_sc[...], c_sc[...]), unroll=unroll)
        h_sc[...] = h
        c_sc[...] = c
    else:
        @pl.when(chunk != num_chunks - 1)
        def _full_chunk():
            h, c = lax.fori_loop(0, n_groups_full, full_group,
                                 (h_sc[...], c_sc[...]), unroll=unroll)
            h_sc[...] = h
            c_sc[...] = c

        @pl.when(chunk == num_chunks - 1)
        def _tail_chunk():
            # Dynamic trip count over row-groups; only the final (partial)
            # group needs per-step masking, and only on this last chunk.
            base_t = chunk * TT
            n_groups = (seq_len - base_t + G - 1) // G

            def tail_group(g, carry):
                h, c = carry
                slab = gx_ref[g].astype(jnp.float32)
                for j in range(G):
                    h_new, c_new = cell(slab[j * B:(j + 1) * B, :], h, c)
                    valid = (base_t + g * G + j) < seq_len
                    h = jnp.where(valid, h_new, h)
                    c = jnp.where(valid, c_new, c)
                return h, c

            h, c = lax.fori_loop(0, n_groups, tail_group,
                                 (h_sc[...], c_sc[...]))
            h_sc[...] = h
            c_sc[...] = c

    @pl.when(chunk == num_chunks - 1)
    def _emit():
        h_out_ref[...] = h_sc[...].astype(h_out_ref.dtype)


def _prepare_gate_params(w_ih, w_hh, b_ih, b_hh, hidden_size, hidden_pad, mm_dtype):
    """PyTorch LSTM params (gate order i,f,g,o) -> kernel layout.

    Per-gate columns are zero-padded to Hp (lane-aligned, keeps padded hidden
    units exactly 0) and reordered to [i, f, o, g] so the sigmoid gates are
    contiguous.
    """
    H, Hp = hidden_size, hidden_pad

    def to_kernel(w):   # (rows, 4H) torch order i,f,g,o -> (rows, 4Hp) order i,f,o,g
        i, f, g, o = jnp.split(w, 4, axis=1)
        return jnp.concatenate(
            [jnp.pad(blk, ((0, 0), (0, Hp - H))) for blk in (i, f, o, g)], axis=1)

    w_ih_k = to_kernel(w_ih.T)                                    # (D, 4Hp)
    w_hh_k = to_kernel(jnp.pad(w_hh.T, ((0, Hp - H), (0, 0))))    # (Hp, 4Hp)
    b_k = to_kernel((b_ih + b_hh).reshape(1, -1))                 # (1, 4Hp)
    return (w_ih_k.astype(mm_dtype), w_hh_k.astype(mm_dtype),
            b_k.astype(jnp.float32))


def global_rnn_forward(x, params, *, hidden_size, time_chunk=64,
                       mm_dtype=jnp.float32, gx_dtype=jnp.float32, unroll=None):
    """GlobalRNN(is_tm=False) forward.  x: (B, T, D) float32 (batch_first)."""
    B, T, D = x.shape
    H = hidden_size
    Hp = _round_up(H, 128)                       # lane-aligned per-gate blocks
    w_ih, w_hh, b_ih, b_hh, w_lin, b_lin = params
    w_ih_k, w_hh_k, b_k = _prepare_gate_params(w_ih, w_hh, b_ih, b_hh,
                                               H, Hp, mm_dtype)

    # Pack G timesteps per 8-sublane row group (dense gates_x VMEM tile / DMA).
    G = 8 // B if (B < 8 and 8 % B == 0) else 1
    TT = _round_up(max(1, min(time_chunk, T)), G)
    T_pad = _round_up(T, TT)
    num_chunks = T_pad // TT
    has_tail = (T % TT) != 0

    # ---- Hoisted input projection: ONE big MXU-friendly matmul, off the
    # serial critical path, done by XLA in the wrapper. ----
    x_tbd = jnp.transpose(x, (1, 0, 2)).astype(jnp.float32)       # (T, B, D)
    if T_pad != T:
        x_tbd = jnp.pad(x_tbd, ((0, T_pad - T), (0, 0), (0, 0)))
    x2d = x_tbd.reshape(T_pad * B, D).astype(mm_dtype)
    gx = jnp.dot(x2d, w_ih_k, preferred_element_type=jnp.float32) + b_k
    gx = gx.astype(gx_dtype).reshape(T_pad // G, G * B, 4 * Hp)

    if unroll is None:
        unroll = TT // G                        # fully unroll the chunk loop
    unroll = max(1, min(int(unroll), TT // G))

    kernel = functools.partial(_lstm_chunk_kernel, seq_len=T, batch=B,
                               mm_dtype=mm_dtype, unroll=unroll,
                               has_tail=has_tail)

    gx_item = jnp.dtype(gx_dtype).itemsize
    mm_item = jnp.dtype(mm_dtype).itemsize
    vmem_needed = (2 * TT * B * 4 * Hp * gx_item   # gates_x chunk (double-buffered, dense)
                   + Hp * 4 * Hp * mm_item         # W_hh resident copy
                   + 2 * 8 * Hp * 4                # h, c state (sublane-padded)
                   + 2 * 8 * Hp * 4)               # h_T output block
    vmem_limit = int(min(_vmem_capacity_bytes() * 3 // 4,
                         max(16 << 20, 2 * vmem_needed + (4 << 20))))

    h_last = pl.pallas_call(
        kernel,
        out_shape=jax.ShapeDtypeStruct((B, Hp), jnp.float32),
        grid_spec=pltpu.PrefetchScalarGridSpec(
            num_scalar_prefetch=0,
            grid=(num_chunks,),
            in_specs=[
                pl.BlockSpec((TT // G, G * B, 4 * Hp),
                             lambda c: (c, 0, 0)),          # gates_x chunk
                pl.BlockSpec(memory_space=pl.ANY),           # W_hh (HBM, copied once)
            ],
            out_specs=pl.BlockSpec((B, Hp), lambda c: (0, 0)),
            scratch_shapes=[
                pltpu.VMEM((Hp, 4 * Hp), mm_dtype),   # W_hh resident copy
                pltpu.VMEM((B, Hp), jnp.float32),     # h
                pltpu.VMEM((B, Hp), jnp.float32),     # c
                pltpu.SemaphoreType.DMA(()),          # weight-copy semaphore
            ],
        ),
        compiler_params=pltpu.CompilerParams(
            dimension_semantics=("arbitrary",),       # time axis is serial
            vmem_limit_bytes=vmem_limit),
    )(gx, w_hh_k)

    # Final Linear(ReLU(h_T)): runs once per call, so it stays in the XLA
    # wrapper; kernel output is lane-dense (B, Hp), not a masked (B, 6) store.
    return jnp.maximum(h_last[:, :H], 0.0) @ w_lin.T + b_lin


def init_params(key, input_dim, hidden_size):
    """PyTorch-layout params, uniform(-k, k) with k = 1/sqrt(H) like nn.LSTM/Linear."""
    k = 1.0 / math.sqrt(hidden_size)
    ks = jax.random.split(key, 6)
    w_ih = jax.random.uniform(ks[0], (4 * hidden_size, input_dim), jnp.float32, -k, k)
    w_hh = jax.random.uniform(ks[1], (4 * hidden_size, hidden_size), jnp.float32, -k, k)
    b_ih = jax.random.uniform(ks[2], (4 * hidden_size,), jnp.float32, -k, k)
    b_hh = jax.random.uniform(ks[3], (4 * hidden_size,), jnp.float32, -k, k)
    w_lin = jax.random.uniform(ks[4], (input_dim, hidden_size), jnp.float32, -k, k)
    b_lin = jax.random.uniform(ks[5], (input_dim,), jnp.float32, -k, k)
    return (w_ih, w_hh, b_ih, b_hh, w_lin, b_lin)


def reference_forward(x, params):
    """Pure-JAX reference of the PyTorch module (LSTM + Linear(ReLU(h_T)))."""
    w_ih, w_hh, b_ih, b_hh, w_lin, b_lin = params
    B, T, D = x.shape
    H = w_hh.shape[1]
    w_ih_t, w_hh_t, b = w_ih.T, w_hh.T, b_ih + b_hh

    def step(carry, x_t):
        h, c = carry
        g = x_t @ w_ih_t + h @ w_hh_t + b
        i = jax.nn.sigmoid(g[:, 0 * H:1 * H])
        f = jax.nn.sigmoid(g[:, 1 * H:2 * H])
        gg = jnp.tanh(g[:, 2 * H:3 * H])
        o = jax.nn.sigmoid(g[:, 3 * H:4 * H])
        c = f * c + i * gg
        h = o * jnp.tanh(c)
        return (h, c), None

    h0 = jnp.zeros((B, H), jnp.float32)
    (h_last, _), _ = lax.scan(step, (h0, h0), jnp.transpose(x, (1, 0, 2)))
    return jnp.maximum(h_last, 0.0) @ w_lin.T + b_lin


if __name__ == "__main__":
    # GlobalRNN defaults: input_dim=6; pick hidden_size=32, batch=2, seq=8.
    B, T, D, H = 2, 8, 6, 32
    key = jax.random.PRNGKey(0)
    kx, kp, kx2 = jax.random.split(key, 3)
    x = jax.random.normal(kx, (B, T, D), jnp.float32)
    params = init_params(kp, D, H)

    ref = reference_forward(x, params)

    # f32 MXU operands: must match the pure-JAX reference tightly.
    out_f32 = jax.block_until_ready(
        global_rnn_forward(x, params, hidden_size=H, mm_dtype=jnp.float32))
    assert out_f32.shape == (B, D)
    assert jnp.allclose(out_f32, ref, atol=1e-5, rtol=1e-5), "f32 mismatch vs reference"

    # Multi-chunk + ragged-tail path: T=11 with time_chunk=4 -> chunks 4,4,3
    # (exercises the dynamic-trip-count tail branch).
    x2 = jax.random.normal(kx2, (B, 11, D), jnp.float32)
    ref2 = reference_forward(x2, params)
    out_tail = jax.block_until_ready(
        global_rnn_forward(x2, params, hidden_size=H, time_chunk=4,
                           mm_dtype=jnp.float32))
    assert jnp.allclose(out_tail, ref2, atol=1e-4, rtol=1e-4), "tail-chunk mismatch"

    # bf16 MXU operands + bf16 gates_x stream (perf config), f32 state/accum.
    out_bf16 = jax.block_until_ready(
        global_rnn_forward(x, params, hidden_size=H,
                           mm_dtype=jnp.bfloat16, gx_dtype=jnp.bfloat16))
    assert float(jnp.max(jnp.abs(out_bf16 - ref))) < 0.25, "bf16 sanity check failed"

    print("KERNEL_OK")
</pallas_src>

<mosaic_0001>
module attributes {stable_mosaic.version = 11 : i64} {
  func.func @_lstm_chunk_kernel(%arg0: i32, %arg1: memref<2x8x512xf32, #tpu.memory_space<vmem>>, %arg2: memref<128x512xf32, #tpu.memory_space<any>>, %arg3: memref<2x128xf32, #tpu.memory_space<vmem>>, %arg4: memref<128x512xf32, #tpu.memory_space<vmem>>, %arg5: memref<2x128xf32, #tpu.memory_space<vmem>>, %arg6: memref<2x128xf32, #tpu.memory_space<vmem>>, %arg7: memref<!tpu.dma_semaphore, #tpu.memory_space<semaphore_mem>>) attributes {dimension_semantics = [#tpu.dimension_semantics<arbitrary>], iteration_bounds = array<i64: 1>, scalar_prefetch = 0 : i64, scratch_operands = 4 : i64, tpu.core_type = #tpu.core_type<tc>, window_params = [{transform_indices = @transform_0, window_bounds = array<i64: 2, 8, 512>}, {}, {pipeline_mode = #tpu.pipeline_mode<synchronous>, transform_indices = @transform_2, window_bounds = array<i64: 2, 128>}]} {
    %c0_i32 = arith.constant 0 : i32
    %0 = arith.cmpi eq, %arg0, %c0_i32 : i32
    %1 = arith.extui %0 : i1 to i32
    %c0_i32_0 = arith.constant 0 : i32
    %2 = arith.cmpi ne, %1, %c0_i32_0 : i32
    scf.if %2 {
      tpu.enqueue_dma source(%arg2 : memref<128x512xf32, #tpu.memory_space<any>>) target(%arg4 : memref<128x512xf32, #tpu.memory_space<vmem>>) target_semaphore(%arg7 : memref<!tpu.dma_semaphore, #tpu.memory_space<semaphore_mem>>)
      %cst_32 = arith.constant 0.000000e+00 : f32
      %169 = vector.broadcast %cst_32 : f32 to vector<2x128xf32>
      %c0_33 = arith.constant 0 : index
      %c0_34 = arith.constant 0 : index
      %170 = vector.load %arg5[%c0_33, %c0_34] : memref<2x128xf32, #tpu.memory_space<vmem>>, vector<2x128xf32>
      tpu.vector_store %arg5[%c0_33, %c0_34], %169 {strides = array<i32>} : memref<2x128xf32, #tpu.memory_space<vmem>>, vector<2x128xf32>,
      %cst_35 = arith.constant 0.000000e+00 : f32
      %171 = vector.broadcast %cst_35 : f32 to vector<2x128xf32>
      %c0_36 = arith.constant 0 : index
      %c0_37 = arith.constant 0 : index
      %172 = vector.load %arg6[%c0_36, %c0_37] : memref<2x128xf32, #tpu.memory_space<vmem>>, vector<2x128xf32>
      tpu.vector_store %arg6[%c0_36, %c0_37], %171 {strides = array<i32>} : memref<2x128xf32, #tpu.memory_space<vmem>>, vector<2x128xf32>,
      tpu.wait_dma2 semaphore(%arg7 : memref<!tpu.dma_semaphore, #tpu.memory_space<semaphore_mem>>) src(%arg2 : memref<128x512xf32, #tpu.memory_space<any>>) dst(%arg4 : memref<128x512xf32, #tpu.memory_space<vmem>>)
    } else {
    }
    %c0 = arith.constant 0 : index
    %c0_1 = arith.constant 0 : index
    %3 = vector.load %arg4[%c0, %c0_1] : memref<128x512xf32, #tpu.memory_space<vmem>>, vector<128x512xf32>
    %c0_2 = arith.constant 0 : index
    %c0_3 = arith.constant 0 : index
    %4 = vector.load %arg5[%c0_2, %c0_3] : memref<2x128xf32, #tpu.memory_space<vmem>>, vector<2x128xf32>
    %c0_4 = arith.constant 0 : index
    %c0_5 = arith.constant 0 : index
    %5 = vector.load %arg6[%c0_4, %c0_5] : memref<2x128xf32, #tpu.memory_space<vmem>>, vector<2x128xf32>
    %c0_i32_6 = arith.constant 0 : i32
    %6 = arith.index_cast %c0_i32_6 : i32 to index
    %c0_7 = arith.constant 0 : index
    %c0_8 = arith.constant 0 : index
    %7 = vector.load %arg1[%6, %c0_7, %c0_8] : memref<2x8x512xf32, #tpu.memory_space<vmem>>, vector<1x8x512xf32>
    %8 = vector.shape_cast %7 : vector<1x8x512xf32> to vector<8x512xf32>
    %9 = vector.extract_strided_slice %8 {offsets = [0, 0], sizes = [2, 512], strides = [1, 1]} : vector<8x512xf32> to vector<2x512xf32>
    %cst = arith.constant dense<0.000000e+00> : vector<2x512xf32>
    %10 = tpu.matmul %4, %3, %cst {dimension_numbers = #tpu.dot_dimension_numbers<[1], [0], [0], [1], [0, 0, 1, 1], [], []>} : vector<2x128xf32>, vector<128x512xf32>, vector<2x512xf32> -> vector<2x512xf32>
    %11 = arith.addf %9, %10 : vector<2x512xf32>
    %12 = vector.extract_strided_slice %11 {offsets = [0, 0], sizes = [2, 384], strides = [1, 1]} : vector<2x512xf32> to vector<2x384xf32>
    %13 = arith.negf %12 : vector<2x384xf32>
    %14 = math.exp %13 : vector<2x384xf32>
    %cst_9 = arith.constant 1.000000e+00 : f32
    %15 = vector.broadcast %cst_9 : f32 to vector<2x384xf32>
    %16 = arith.addf %15, %14 : vector<2x384xf32>
    %17 = arith.divf %15, %16 : vector<2x384xf32>
    %18 = vector.extract_strided_slice %11 {offsets = [0, 384], sizes = [2, 128], strides = [1, 1]} : vector<2x512xf32> to vector<2x128xf32>
    %19 = math.tanh %18 : vector<2x128xf32>
    %20 = vector.extract_strided_slice %17 {offsets = [0, 0], sizes = [2, 128], strides = [1, 1]} : vector<2x384xf32> to vector<2x128xf32>
    %21 = vector.extract_strided_slice %17 {offsets = [0, 128], sizes = [2, 128], strides = [1, 1]} : vector<2x384xf32> to vector<2x128xf32>
    %22 = vector.extract_strided_slice %17 {offsets = [0, 256], sizes = [2, 128], strides = [1, 1]} : vector<2x384xf32> to vector<2x128xf32>
    %23 = arith.mulf %21, %5 : vector<2x128xf32>
    %24 = arith.mulf %20, %19 : vector<2x128xf32>
    %25 = arith.addf %23, %24 : vector<2x128xf32>
    %26 = math.tanh %25 : vector<2x128xf32>
    %27 = arith.mulf %22, %26 : vector<2x128xf32>
    %28 = vector.extract_strided_slice %8 {offsets = [2, 0], sizes = [2, 512], strides = [1, 1]} : vector<8x512xf32> to vector<2x512xf32>
    %cst_10 = arith.constant dense<0.000000e+00> : vector<2x512xf32>
    %29 = tpu.matmul %27, %3, %cst_10 {dimension_numbers = #tpu.dot_dimension_numbers<[1], [0], [0], [1], [0, 0, 1, 1], [], []>} : vector<2x128xf32>, vector<128x512xf32>, vector<2x512xf32> -> vector<2x512xf32>
    %30 = arith.addf %28, %29 : vector<2x512xf32>
    %31 = vector.extract_strided_slice %30 {offsets = [0, 0], sizes = [2, 384], strides = [1, 1]} : vector<2x512xf32> to vector<2x384xf32>
    %32 = arith.negf %31 : vector<2x384xf32>
    %33 = math.exp %32 : vector<2x384xf32>
    %cst_11 = arith.constant 1.000000e+00 : f32
    %34 = vector.broadcast %cst_11 : f32 to vector<2x384xf32>
    %35 = arith.addf %34, %33 : vector<2x384xf32>
    %36 = arith.divf %34, %35 : vector<2x384xf32>
    %37 = vector.extract_strided_slice %30 {offsets = [0, 384], sizes = [2, 128], strides = [1, 1]} : vector<2x512xf32> to vector<2x128xf32>
    %38 = math.tanh %37 : vector<2x128xf32>
    %39 = vector.extract_strided_slice %36 {offsets = [0, 0], sizes = [2, 128], strides = [1, 1]} : vector<2x384xf32> to vector<2x128xf32>
    %40 = vector.extract_strided_slice %36 {offsets = [0, 128], sizes = [2, 128], strides = [1, 1]} : vector<2x384xf32> to vector<2x128xf32>
    %41 = vector.extract_strided_slice %36 {offsets = [0, 256], sizes = [2, 128], strides = [1, 1]} : vector<2x384xf32> to vector<2x128xf32>
    %42 = arith.mulf %40, %25 : vector<2x128xf32>
    %43 = arith.mulf %39, %38 : vector<2x128xf32>
    %44 = arith.addf %42, %43 : vector<2x128xf32>
    %45 = math.tanh %44 : vector<2x128xf32>
    %46 = arith.mulf %41, %45 : vector<2x128xf32>
    %47 = vector.extract_strided_slice %8 {offsets = [4, 0], sizes = [2, 512], strides = [1, 1]} : vector<8x512xf32> to vector<2x512xf32>
    %cst_12 = arith.constant dense<0.000000e+00> : vector<2x512xf32>
    %48 = tpu.matmul %46, %3, %cst_12 {dimension_numbers = #tpu.dot_dimension_numbers<[1], [0], [0], [1], [0, 0, 1, 1], [], []>} : vector<2x128xf32>, vector<128x512xf32>, vector<2x512xf32> -> vector<2x512xf32>
    %49 = arith.addf %47, %48 : vector<2x512xf32>
    %50 = vector.extract_strided_slice %49 {offsets = [0, 0], sizes = [2, 384], strides = [1, 1]} : vector<2x512xf32> to vector<2x384xf32>
    %51 = arith.negf %50 : vector<2x384xf32>
    %52 = math.exp %51 : vector<2x384xf32>
    %cst_13 = arith.constant 1.000000e+00 : f32
    %53 = vector.broadcast %cst_13 : f32 to vector<2x384xf32>
    %54 = arith.addf %53, %52 : vector<2x384xf32>
    %55 = arith.divf %53, %54 : vector<2x384xf32>
    %56 = vector.extract_strided_slice %49 {offsets = [0, 384], sizes = [2, 128], strides = [1, 1]} : vector<2x512xf32> to vector<2x128xf32>
    %57 = math.tanh %56 : vector<2x128xf32>
    %58 = vector.extract_strided_slice %55 {offsets = [0, 0], sizes = [2, 128], strides = [1, 1]} : vector<2x384xf32> to vector<2x128xf32>
    %59 = vector.extract_strided_slice %55 {offsets = [0, 128], sizes = [2, 128], strides = [1, 1]} : vector<2x384xf32> to vector<2x128xf32>
    %60 = vector.extract_strided_slice %55 {offsets = [0, 256], sizes = [2, 128], strides = [1, 1]} : vector<2x384xf32> to vector<2x128xf32>
    %61 = arith.mulf %59, %44 : vector<2x128xf32>
    %62 = arith.mulf %58, %57 : vector<2x128xf32>
    %63 = arith.addf %61, %62 : vector<2x128xf32>
    %64 = math.tanh %63 : vector<2x128xf32>
    %65 = arith.mulf %60, %64 : vector<2x128xf32>
    %66 = vector.extract_strided_slice %8 {offsets = [6, 0], sizes = [2, 512], strides = [1, 1]} : vector<8x512xf32> to vector<2x512xf32>
    %cst_14 = arith.constant dense<0.000000e+00> : vector<2x512xf32>
    %67 = tpu.matmul %65, %3, %cst_14 {dimension_numbers = #tpu.dot_dimension_numbers<[1], [0], [0], [1], [0, 0, 1, 1], [], []>} : vector<2x128xf32>, vector<128x512xf32>, vector<2x512xf32> -> vector<2x512xf32>
    %68 = arith.addf %66, %67 : vector<2x512xf32>
    %69 = vector.extract_strided_slice %68 {offsets = [0, 0], sizes = [2, 384], strides = [1, 1]} : vector<2x512xf32> to vector<2x384xf32>
    %70 = arith.negf %69 : vector<2x384xf32>
    %71 = math.exp %70 : vector<2x384xf32>
    %cst_15 = arith.constant 1.000000e+00 : f32
    %72 = vector.broadcast %cst_15 : f32 to vector<2x384xf32>
    %73 = arith.addf %72, %71 : vector<2x384xf32>
    %74 = arith.divf %72, %73 : vector<2x384xf32>
    %75 = vector.extract_strided_slice %68 {offsets = [0, 384], sizes = [2, 128], strides = [1, 1]} : vector<2x512xf32> to vector<2x128xf32>
    %76 = math.tanh %75 : vector<2x128xf32>
    %77 = vector.extract_strided_slice %74 {offsets = [0, 0], sizes = [2, 128], strides = [1, 1]} : vector<2x384xf32> to vector<2x128xf32>
    %78 = vector.extract_strided_slice %74 {offsets = [0, 128], sizes = [2, 128], strides = [1, 1]} : vector<2x384xf32> to vector<2x128xf32>
    %79 = vector.extract_strided_slice %74 {offsets = [0, 256], sizes = [2, 128], strides = [1, 1]} : vector<2x384xf32> to vector<2x128xf32>
    %80 = arith.mulf %78, %63 : vector<2x128xf32>
    %81 = arith.mulf %77, %76 : vector<2x128xf32>
    %82 = arith.addf %80, %81 : vector<2x128xf32>
    %83 = math.tanh %82 : vector<2x128xf32>
    %84 = arith.mulf %79, %83 : vector<2x128xf32>
    %c1_i32 = arith.constant 1 : i32
    %85 = arith.index_cast %c1_i32 : i32 to index
    %c0_16 = arith.constant 0 : index
    %c0_17 = arith.constant 0 : index
    %86 = vector.load %arg1[%85, %c0_16, %c0_17] : memref<2x8x512xf32, #tpu.memory_space<vmem>>, vector<1x8x512xf32>
    %87 = vector.shape_cast %86 : vector<1x8x512xf32> to vector<8x512xf32>
    %88 = vector.extract_strided_slice %87 {offsets = [0, 0], sizes = [2, 512], strides = [1, 1]} : vector<8x512xf32> to vector<2x512xf32>
    %cst_18 = arith.constant dense<0.000000e+00> : vector<2x512xf32>
    %89 = tpu.matmul %84, %3, %cst_18 {dimension_numbers = #tpu.dot_dimension_numbers<[1], [0], [0], [1], [0, 0, 1, 1], [], []>} : vector<2x128xf32>, vector<128x512xf32>, vector<2x512xf32> -> vector<2x512xf32>
    %90 = arith.addf %88, %89 : vector<2x512xf32>
    %91 = vector.extract_strided_slice %90 {offsets = [0, 0], sizes = [2, 384], strides = [1, 1]} : vector<2x512xf32> to vector<2x384xf32>
    %92 = arith.negf %91 : vector<2x384xf32>
    %93 = math.exp %92 : vector<2x384xf32>
    %cst_19 = arith.constant 1.000000e+00 : f32
    %94 = vector.broadcast %cst_19 : f32 to vector<2x384xf32>
    %95 = arith.addf %94, %93 : vector<2x384xf32>
    %96 = arith.divf %94, %95 : vector<2x384xf32>
    %97 = vector.extract_strided_slice %90 {offsets = [0, 384], sizes = [2, 128], strides = [1, 1]} : vector<2x512xf32> to vector<2x128xf32>
    %98 = math.tanh %97 : vector<2x128xf32>
    %99 = vector.extract_strided_slice %96 {offsets = [0, 0], sizes = [2, 128], strides = [1, 1]} : vector<2x384xf32> to vector<2x128xf32>
    %100 = vector.extract_strided_slice %96 {offsets = [0, 128], sizes = [2, 128], strides = [1, 1]} : vector<2x384xf32> to vector<2x128xf32>
    %101 = vector.extract_strided_slice %96 {offsets = [0, 256], sizes = [2, 128], strides = [1, 1]} : vector<2x384xf32> to vector<2x128xf32>
    %102 = arith.mulf %100, %82 : vector<2x128xf32>
    %103 = arith.mulf %99, %98 : vector<2x128xf32>
    %104 = arith.addf %102, %103 : vector<2x128xf32>
    %105 = math.tanh %104 : vector<2x128xf32>
    %106 = arith.mulf %101, %105 : vector<2x128xf32>
    %107 = vector.extract_strided_slice %87 {offsets = [2, 0], sizes = [2, 512], strides = [1, 1]} : vector<8x512xf32> to vector<2x512xf32>
    %cst_20 = arith.constant dense<0.000000e+00> : vector<2x512xf32>
    %108 = tpu.matmul %106, %3, %cst_20 {dimension_numbers = #tpu.dot_dimension_numbers<[1], [0], [0], [1], [0, 0, 1, 1], [], []>} : vector<2x128xf32>, vector<128x512xf32>, vector<2x512xf32> -> vector<2x512xf32>
    %109 = arith.addf %107, %108 : vector<2x512xf32>
    %110 = vector.extract_strided_slice %109 {offsets = [0, 0], sizes = [2, 384], strides = [1, 1]} : vector<2x512xf32> to vector<2x384xf32>
    %111 = arith.negf %110 : vector<2x384xf32>
    %112 = math.exp %111 : vector<2x384xf32>
    %cst_21 = arith.constant 1.000000e+00 : f32
    %113 = vector.broadcast %cst_21 : f32 to vector<2x384xf32>
    %114 = arith.addf %113, %112 : vector<2x384xf32>
    %115 = arith.divf %113, %114 : vector<2x384xf32>
    %116 = vector.extract_strided_slice %109 {offsets = [0, 384], sizes = [2, 128], strides = [1, 1]} : vector<2x512xf32> to vector<2x128xf32>
    %117 = math.tanh %116 : vector<2x128xf32>
    %118 = vector.extract_strided_slice %115 {offsets = [0, 0], sizes = [2, 128], strides = [1, 1]} : vector<2x384xf32> to vector<2x128xf32>
    %119 = vector.extract_strided_slice %115 {offsets = [0, 128], sizes = [2, 128], strides = [1, 1]} : vector<2x384xf32> to vector<2x128xf32>
    %120 = vector.extract_strided_slice %115 {offsets = [0, 256], sizes = [2, 128], strides = [1, 1]} : vector<2x384xf32> to vector<2x128xf32>
    %121 = arith.mulf %119, %104 : vector<2x128xf32>
    %122 = arith.mulf %118, %117 : vector<2x128xf32>
    %123 = arith.addf %121, %122 : vector<2x128xf32>
    %124 = math.tanh %123 : vector<2x128xf32>
    %125 = arith.mulf %120, %124 : vector<2x128xf32>
    %126 = vector.extract_strided_slice %87 {offsets = [4, 0], sizes = [2, 512], strides = [1, 1]} : vector<8x512xf32> to vector<2x512xf32>
    %cst_22 = arith.constant dense<0.000000e+00> : vector<2x512xf32>
    %127 = tpu.matmul %125, %3, %cst_22 {dimension_numbers = #tpu.dot_dimension_numbers<[1], [0], [0], [1], [0, 0, 1, 1], [], []>} : vector<2x128xf32>, vector<128x512xf32>, vector<2x512xf32> -> vector<2x512xf32>
    %128 = arith.addf %126, %127 : vector<2x512xf32>
    %129 = vector.extract_strided_slice %128 {offsets = [0, 0], sizes = [2, 384], strides = [1, 1]} : vector<2x512xf32> to vector<2x384xf32>
    %130 = arith.negf %129 : vector<2x384xf32>
    %131 = math.exp %130 : vector<2x384xf32>
    %cst_23 = arith.constant 1.000000e+00 : f32
    %132 = vector.broadcast %cst_23 : f32 to vector<2x384xf32>
    %133 = arith.addf %132, %131 : vector<2x384xf32>
    %134 = arith.divf %132, %133 : vector<2x384xf32>
    %135 = vector.extract_strided_slice %128 {offsets = [0, 384], sizes = [2, 128], strides = [1, 1]} : vector<2x512xf32> to vector<2x128xf32>
    %136 = math.tanh %135 : vector<2x128xf32>
    %137 = vector.extract_strided_slice %134 {offsets = [0, 0], sizes = [2, 128], strides = [1, 1]} : vector<2x384xf32> to vector<2x128xf32>
    %138 = vector.extract_strided_slice %134 {offsets = [0, 128], sizes = [2, 128], strides = [1, 1]} : vector<2x384xf32> to vector<2x128xf32>
    %139 = vector.extract_strided_slice %134 {offsets = [0, 256], sizes = [2, 128], strides = [1, 1]} : vector<2x384xf32> to vector<2x128xf32>
    %140 = arith.mulf %138, %123 : vector<2x128xf32>
    %141 = arith.mulf %137, %136 : vector<2x128xf32>
    %142 = arith.addf %140, %141 : vector<2x128xf32>
    %143 = math.tanh %142 : vector<2x128xf32>
    %144 = arith.mulf %139, %143 : vector<2x128xf32>
    %145 = vector.extract_strided_slice %87 {offsets = [6, 0], sizes = [2, 512], strides = [1, 1]} : vector<8x512xf32> to vector<2x512xf32>
    %cst_24 = arith.constant dense<0.000000e+00> : vector<2x512xf32>
    %146 = tpu.matmul %144, %3, %cst_24 {dimension_numbers = #tpu.dot_dimension_numbers<[1], [0], [0], [1], [0, 0, 1, 1], [], []>} : vector<2x128xf32>, vector<128x512xf32>, vector<2x512xf32> -> vector<2x512xf32>
    %147 = arith.addf %145, %146 : vector<2x512xf32>
    %148 = vector.extract_strided_slice %147 {offsets = [0, 0], sizes = [2, 384], strides = [1, 1]} : vector<2x512xf32> to vector<2x384xf32>
    %149 = arith.negf %148 : vector<2x384xf32>
    %150 = math.exp %149 : vector<2x384xf32>
    %cst_25 = arith.constant 1.000000e+00 : f32
    %151 = vector.broadcast %cst_25 : f32 to vector<2x384xf32>
    %152 = arith.addf %151, %150 : vector<2x384xf32>
    %153 = arith.divf %151, %152 : vector<2x384xf32>
    %154 = vector.extract_strided_slice %147 {offsets = [0, 384], sizes = [2, 128], strides = [1, 1]} : vector<2x512xf32> to vector<2x128xf32>
    %155 = math.tanh %154 : vector<2x128xf32>
    %156 = vector.extract_strided_slice %153 {offsets = [0, 0], sizes = [2, 128], strides = [1, 1]} : vector<2x384xf32> to vector<2x128xf32>
    %157 = vector.extract_strided_slice %153 {offsets = [0, 128], sizes = [2, 128], strides = [1, 1]} : vector<2x384xf32> to vector<2x128xf32>
    %158 = vector.extract_strided_slice %153 {offsets = [0, 256], sizes = [2, 128], strides = [1, 1]} : vector<2x384xf32> to vector<2x128xf32>
    %159 = arith.mulf %157, %142 : vector<2x128xf32>
    %160 = arith.mulf %156, %155 : vector<2x128xf32>
    %161 = arith.addf %159, %160 : vector<2x128xf32>
    %162 = math.tanh %161 : vector<2x128xf32>
    %163 = arith.mulf %158, %162 : vector<2x128xf32>
    %c2_i32 = arith.constant 2 : i32
    %c0_26 = arith.constant 0 : index
    %c0_27 = arith.constant 0 : index
    %164 = vector.load %arg5[%c0_26, %c0_27] : memref<2x128xf32, #tpu.memory_space<vmem>>, vector<2x128xf32>
    tpu.vector_store %arg5[%c0_26, %c0_27], %163 {strides = array<i32>} : memref<2x128xf32, #tpu.memory_space<vmem>>, vector<2x128xf32>,
    %c0_28 = arith.constant 0 : index
    %c0_29 = arith.constant 0 : index
    %165 = vector.load %arg6[%c0_28, %c0_29] : memref<2x128xf32, #tpu.memory_space<vmem>>, vector<2x128xf32>
    tpu.vector_store %arg6[%c0_28, %c0_29], %161 {strides = array<i32>} : memref<2x128xf32, #tpu.memory_space<vmem>>, vector<2x128xf32>,
    %c0_i32_30 = arith.constant 0 : i32
    %166 = arith.cmpi eq, %arg0, %c0_i32_30 : i32
    %167 = arith.extui %166 : i1 to i32
    %c0_i32_31 = arith.constant 0 : i32
    %168 = arith.cmpi ne, %167, %c0_i32_31 : i32
    scf.if %168 {
      %c0_32 = arith.constant 0 : index
      %c0_33 = arith.constant 0 : index
      %169 = vector.load %arg5[%c0_32, %c0_33] : memref<2x128xf32, #tpu.memory_space<vmem>>, vector<2x128xf32>
      %c0_34 = arith.constant 0 : index
      %c0_35 = arith.constant 0 : index
      %170 = vector.load %arg3[%c0_34, %c0_35] : memref<2x128xf32, #tpu.memory_space<vmem>>, vector<2x128xf32>
      tpu.vector_store %arg3[%c0_34, %c0_35], %169 {strides = array<i32>} : memref<2x128xf32, #tpu.memory_space<vmem>>, vector<2x128xf32>,
    } else {
    }
    return
  }
  func.func @transform_0(%arg0: i32) -> (i32, i32, i32) {
    %c0_i32 = arith.constant 0 : i32
    %c0_i32_0 = arith.constant 0 : i32
    %c0_i32_1 = arith.constant 0 : i32
    return %arg0, %c0_i32, %c0_i32_0 : i32, i32, i32
  }
  func.func @transform_2(%arg0: i32) -> (i32, i32) {
    %c0_i32 = arith.constant 0 : i32
    %c0_i32_0 = arith.constant 0 : i32
    %c0_i32_1 = arith.constant 0 : i32
    return %c0_i32, %c0_i32_0 : i32, i32
  }
}

</mosaic_0001>

<llo_original>
// kernel: tpu_custom_call.1
$region0: #{tpu_custom_call.1}
  #allocation0 [shape = 'u32[]', space=smem, size = 0x4, offset = 0x4, fixed_abs, tag = 'smem constant byte address 0x4 - core index']
  #allocation1 [shape = 'u32[144,128]{1,0:T(1,128)}', space=vmem, size = 0x12000, scoped, tag = 'internal scratch']
  #allocation2 [shape = 'f32[128,512]{1,0:T(8,128)}', space=vmem, size = 0x40000, scoped, tag = 'scratch operand']
  #allocation3 [shape = 'f32[2,128]{1,0:T(2,128)}', space=vmem, size = 0x400, scoped, tag = 'scratch operand']
  #allocation4 [shape = 'f32[2,128]{1,0:T(2,128)}', space=vmem, size = 0x400, scoped, tag = 'scratch operand']
  #allocation5 [shape = 's32[1]{0}', space=sflag, size = 0x4, scoped, tag = 'scratch operand']
  #allocation10 [shape = 's32[]', space=sflag, size = 0x4, offset = 0, fixed_abs, tag = 'sflag constant byte address 0x0 - dummy sync flag']
  #allocation11 [shape = 's32[]', space=sflag, size = 0x4, offset = 0, fixed_abs, tag = 'sflag constant byte address 0x0 - dummy sync flag']
  #allocation12 [shape = 'u32[]', space=smem, size = 0x4, offset = 0x44, fixed_abs, tag = 'smem constant byte address 0x44 - assertion arg 0']
  #allocation13 [shape = 'u32[]', space=smem, size = 0x4, offset = 0x48, fixed_abs, tag = 'smem constant byte address 0x48 - assertion arg 1']
  %s0 = inlined_call_operand.hbm [shape: f32[2,8,512], index: 0, kind: input, shape index: {}]
  %s1 = inlined_call_operand.hbm [shape: f32[128,512], index: 1, kind: input, shape index: {}]
  %s2 = inlined_call_operand.hbm [shape: f32[2,128], index: 2, kind: output, shape index: {}]
  %s3 = sld [smem:[#allocation0]]
  $region30: #{tpu_custom_call.1} parent=0
    _
  %s5 = ssub.s32 1, %s3
  %s6 = scalar_select 0, %s5, %s3
  $region1: #{tpu_custom_call.1} parent=0
    #allocation6 [shape = 'u8[32768]{0}', space=vmem, size = 0x8000, scoped, tag = 'input window, operand 0, single buffered']
    #allocation7 [shape = 's32[1]{0}', space=sflag, size = 0x4, scoped, tag = 'scoped memory for tpu_custom_call.1']
    #allocation8 [shape = 's32[1]{0}', space=sflag, size = 0x4, scoped, tag = 'scoped memory for tpu_custom_call.1']
    #allocation9 [shape = 'u8[1024]{0}', space=vmem, size = 0x400, scoped, tag = 'output window, operand 0, single buffered']
    %7 = vsyncpa [#allocation7], 0
    %8 = vsyncpa [#allocation8], 0
    // Predicated region
    $region2: #{tpu_custom_call.1} parent=1 // pred_check
      _
    $region3: #{tpu_custom_call.1} parent=1 // pred_check_branch
      %10 = sbr.rel (0) target = $region5
    $region4: #{tpu_custom_call.1} parent=1 // pred_region
      %s12 = ssub.s32 1024, 1024
      %13 = vsyncadd [#allocation7], %s12
      %s14 = sshll.u32 [#allocation6], 4
      %s15 = int_to_ptr.vmem [resolvable:$true] %s14
      %20 = dma.hbm_to_vmem [thread:$0]  %s0, 1024, %s15, [#allocation7], 512, 512, 32
    $region5: #{tpu_custom_call.1} parent=1 // pred_fallthru
      _
    // Predicated region
    $region6: #{tpu_custom_call.1} parent=1 // pred_check
      _
    $region7: #{tpu_custom_call.1} parent=1 // pred_check_branch
      %22 = sbr.rel (0) target = $region9
    $region8: #{tpu_custom_call.1} parent=1 // pred_region
      %23 = dma.done [#allocation7], 1024
    $region9: #{tpu_custom_call.1} parent=1 // pred_fallthru
      _
    %p24 = scmp.eq.s32.totalorder 0, 0
    // Predicated region
    $region10: #{tpu_custom_call.1} parent=1 // pred_check
      %p25 = pneg %p24
    $region11: #{tpu_custom_call.1} parent=1 // pred_check_branch
      %27 = sbr.rel (%p25) target = $region13
    $region12: #{tpu_custom_call.1} parent=1 // pred_region
      // Predicated region
      $region14: #{tpu_custom_call.1} parent=12 // pred_check
        _
      $region15: #{tpu_custom_call.1} parent=12 // pred_check_branch
        %29 = sbr.rel target = $region17
      $region16: #{tpu_custom_call.1} parent=12 // pred_region
        %30 = sst [smem:[#allocation12]] [#allocation11]
        %31 = sst [smem:[#allocation13]] [#allocation10]
      $region17: #{tpu_custom_call.1} parent=12 // pred_fallthru
        _
      %33 = shalt.err (0)
      %s35 = sshll.u32 [#allocation2], 4
      %s36 = int_to_ptr.vmem [resolvable:$true] %s35
      %38 = dma.hbm_to_vmem [thread:$0]  %s1, 8192, %s36, [#allocation5]
      %39 = vst [vmem:[#allocation3] sm:$0x3] 0.0
      %40 = vst [vmem:[#allocation4] sm:$0x3] 0.0
      %s41 = smul.u32 8, 16
      %s42 = smul.u32 %s41, 4
      %s43 = sshll.u32 %s42, 4
      %44 = dma.done [#allocation5], %s43
    $region13: #{tpu_custom_call.1} parent=1 // pred_fallthru
      _
    %v45 = vld [vmem:[#allocation2] sm:$0xff]
    %v46 = vld [vmem:[#allocation2 + $0x8] sm:$0xff]
    %v47 = vld [vmem:[#allocation2 + $0x10] sm:$0xff]
    %v48 = vld [vmem:[#allocation2 + $0x18] sm:$0xff]
    %v49 = vld [vmem:[#allocation2 + $0x20] sm:$0xff]
    %v50 = vld [vmem:[#allocation2 + $0x28] sm:$0xff]
    %v51 = vld [vmem:[#allocation2 + $0x30] sm:$0xff]
    %v52 = vld [vmem:[#allocation2 + $0x38] sm:$0xff]
    %v53 = vld [vmem:[#allocation2 + $0x40] sm:$0xff]
    %v54 = vld [vmem:[#allocation2 + $0x48] sm:$0xff]
    %v55 = vld [vmem:[#allocation2 + $0x50] sm:$0xff]
    %v56 = vld [vmem:[#allocation2 + $0x58] sm:$0xff]
    %v57 = vld [vmem:[#allocation2 + $0x60] sm:$0xff]
    %v58 = vld [vmem:[#allocation2 + $0x68] sm:$0xff]
    %v59 = vld [vmem:[#allocation2 + $0x70] sm:$0xff]
    %v60 = vld [vmem:[#allocation2 + $0x78] sm:$0xff]
    %v61 = vld [vmem:[#allocation2 + $0x80] sm:$0xff]
    %v62 = vld [vmem:[#allocation2 + $0x88] sm:$0xff]
    %v63 = vld [vmem:[#allocation2 + $0x90] sm:$0xff]
    %v64 = vld [vmem:[#allocation2 + $0x98] sm:$0xff]
    %v65 = vld [vmem:[#allocation2 + $0xa0] sm:$0xff]
    %v66 = vld [vmem:[#allocation2 + $0xa8] sm:$0xff]
    %v67 = vld [vmem:[#allocation2 + $0xb0] sm:$0xff]
    %v68 = vld [vmem:[#allocation2 + $0xb8] sm:$0xff]
    %v69 = vld [vmem:[#allocation2 + $0xc0] sm:$0xff]
    %v70 = vld [vmem:[#allocation2 + $0xc8] sm:$0xff]
    %v71 = vld [vmem:[#allocation2 + $0xd0] sm:$0xff]
    %v72 = vld [vmem:[#allocation2 + $0xd8] sm:$0xff]
    %v73 = vld [vmem:[#allocation2 + $0xe0] sm:$0xff]
    %v74 = vld [vmem:[#allocation2 + $0xe8] sm:$0xff]
    %v75 = vld [vmem:[#allocation2 + $0xf0] sm:$0xff]
    %v76 = vld [vmem:[#allocation2 + $0xf8] sm:$0xff]
    %v77 = vld [vmem:[#allocation2 + $0x100] sm:$0xff]
    %v78 = vld [vmem:[#allocation2 + $0x108] sm:$0xff]
    %v79 = vld [vmem:[#allocation2 + $0x110] sm:$0xff]
    %v80 = vld [vmem:[#allocation2 + $0x118] sm:$0xff]
    %v81 = vld [vmem:[#allocation2 + $0x120] sm:$0xff]
    %v82 = vld [vmem:[#allocation2 + $0x128] sm:$0xff]
    %v83 = vld [vmem:[#allocation2 + $0x130] sm:$0xff]
    %v84 = vld [vmem:[#allocation2 + $0x138] sm:$0xff]
    %v85 = vld [vmem:[#allocation2 + $0x140] sm:$0xff]
    %v86 = vld [vmem:[#allocation2 + $0x148] sm:$0xff]
    %v87 = vld [vmem:[#allocation2 + $0x150] sm:$0xff]
    %v88 = vld [vmem:[#allocation2 + $0x158] sm:$0xff]
    %v89 = vld [vmem:[#allocation2 + $0x160] sm:$0xff]
    %v90 = vld [vmem:[#allocation2 + $0x168] sm:$0xff]
    %v91 = vld [vmem:[#allocation2 + $0x170] sm:$0xff]
    %v92 = vld [vmem:[#allocation2 + $0x178] sm:$0xff]
    %v93 = vld [vmem:[#allocation2 + $0x180] sm:$0xff]
    %v94 = vld [vmem:[#allocation2 + $0x188] sm:$0xff]
    %v95 = vld [vmem:[#allocation2 + $0x190] sm:$0xff]
    %v96 = vld [vmem:[#allocation2 + $0x198] sm:$0xff]
    %v97 = vld [vmem:[#allocation2 + $0x1a0] sm:$0xff]
    %v98 = vld [vmem:[#allocation2 + $0x1a8] sm:$0xff]
    %v99 = vld [vmem:[#allocation2 + $0x1b0] sm:$0xff]
    %v100 = vld [vmem:[#allocation2 + $0x1b8] sm:$0xff]
    %v101 = vld [vmem:[#allocation2 + $0x1c0] sm:$0xff]
    %v102 = vld [vmem:[#allocation2 + $0x1c8] sm:$0xff]
    %v103 = vld [vmem:[#allocation2 + $0x1d0] sm:$0xff]
    %v104 = vld [vmem:[#allocation2 + $0x1d8] sm:$0xff]
    %v105 = vld [vmem:[#allocation2 + $0x1e0] sm:$0xff]
    %v106 = vld [vmem:[#allocation2 + $0x1e8] sm:$0xff]
    %v107 = vld [vmem:[#allocation2 + $0x1f0] sm:$0xff]
    %v108 = vld [vmem:[#allocation2 + $0x1f8] sm:$0xff]
    %v109 = vld [vmem:[#allocation3] sm:$0x3]
    %v110 = vld [vmem:[#allocation4] sm:$0x3]
    %v111 = vld [vmem:[#allocation6] sm:$0xff]
    %v112 = vld [vmem:[#allocation6 + $0x8] sm:$0xff]
    %v113 = vld [vmem:[#allocation6 + $0x10] sm:$0xff]
    %v114 = vld [vmem:[#allocation6 + $0x18] sm:$0xff]
    %115 = vmatprep.subr.mxu0 %v106
    %116 = vmatpush1.msra.mxu0 %v105
    %117 = vmatprep.subr.mxu0 %v102
    %118 = vmatpush1.msra.mxu0 %v101
    %119 = vmatprep.subr.mxu0 %v98
    %120 = vmatpush1.msra.mxu0 %v97
    %121 = vmatprep.subr.mxu0 %v94
    %122 = vmatpush1.msra.mxu0 %v93
    %123 = vmatprep.subr.mxu0 %v90
    %124 = vmatpush1.msra.mxu0 %v89
    %125 = vmatprep.subr.mxu0 %v86
    %126 = vmatpush1.msra.mxu0 %v85
    %127 = vmatprep.subr.mxu0 %v82
    %128 = vmatpush1.msra.mxu0 %v81
    %129 = vmatprep.subr.mxu0 %v78
    %130 = vmatpush1.msra.mxu0 %v77
    %131 = vmatprep.subr.mxu0 %v74
    %132 = vmatpush1.msra.mxu0 %v73
    %133 = vmatprep.subr.mxu0 %v70
    %134 = vmatpush1.msra.mxu0 %v69
    %135 = vmatprep.subr.mxu0 %v66
    %136 = vmatpush1.msra.mxu0 %v65
    %137 = vmatprep.subr.mxu0 %v62
    %138 = vmatpush1.msra.mxu0 %v61
    %139 = vmatprep.subr.mxu0 %v58
    %140 = vmatpush1.msra.mxu0 %v57
    %141 = vmatprep.subr.mxu0 %v54
    %142 = vmatpush1.msra.mxu0 %v53
    %143 = vmatprep.subr.mxu0 %v50
    %144 = vmatpush1.msra.mxu0 %v49
    %145 = vmatprep.subr.mxu0 %v46
    %146 = vmatpush1.msra.mxu0 %v45
    %147 = vmatprep.subr.mxu0 0.0
    %148 = vmatpush2.msra.mxu0 0.0
    %149 = vmatprep.subr.mxu0 0.0
    %150 = vmatpush2.msra.mxu0 0.0
    %151 = vmatprep.subr.mxu0 0.0
    %152 = vmatpush2.msra.mxu0 0.0
    %153 = vmatprep.subr.mxu0 0.0
    %154 = vmatpush2.msra.mxu0 0.0
    %155 = vmatprep.subr.mxu0 0.0
    %156 = vmatpush2.msra.mxu0 0.0
    %157 = vmatprep.subr.mxu0 0.0
    %158 = vmatpush2.msra.mxu0 0.0
    %159 = vmatprep.subr.mxu0 0.0
    %160 = vmatpush2.msra.mxu0 0.0
    %161 = vmatprep.subr.mxu0 0.0
    %162 = vmatpush2.msra.mxu0 0.0
    %163 = vmatprep.subr.mxu0 0.0
    %164 = vmatpush2.msra.mxu0 0.0
    %165 = vmatprep.subr.mxu0 0.0
    %166 = vmatpush2.msra.mxu0 0.0
    %167 = vmatprep.subr.mxu0 0.0
    %168 = vmatpush2.msra.mxu0 0.0
    %169 = vmatprep.subr.mxu0 0.0
    %170 = vmatpush2.msra.mxu0 0.0
    %171 = vmatprep.subr.mxu0 0.0
    %172 = vmatpush2.msra.mxu0 0.0
    %173 = vmatprep.subr.mxu0 0.0
    %174 = vmatpush2.msra.mxu0 0.0
    %175 = vmatprep.subr.mxu0 0.0
    %176 = vmatpush2.msra.mxu0 0.0
    %177 = vmatprep.subr.mxu0 0.0
    %178 = vmatpush2.msra.mxu0 0.0
    %179 = vmatprep.mubr.f32.mxu0 0.0
    %180 = vmatmul.mubr.f32.gmra.mxu0 %v109
    %v181 = vpop.f32.mrf.mxu0
    %v182 = vadd.f32 0.0, %v181
    %v183 = vpop.f32.mrf.mxu0
    %v184 = vadd.f32 0.0, %v183
    %185 = vdwg.mxu0
    %186 = vmatprep.subr.mxu0 %v108
    %187 = vmatpush1.msra.mxu0 %v107
    %188 = vmatprep.subr.mxu0 %v104
    %189 = vmatpush1.msra.mxu0 %v103
    %190 = vmatprep.subr.mxu0 %v100
    %191 = vmatpush1.msra.mxu0 %v99
    %192 = vmatprep.subr.mxu0 %v96
    %193 = vmatpush1.msra.mxu0 %v95
    %194 = vmatprep.subr.mxu0 %v92
    %195 = vmatpush1.msra.mxu0 %v91
    %196 = vmatprep.subr.mxu0 %v88
    %197 = vmatpush1.msra.mxu0 %v87
    %198 = vmatprep.subr.mxu0 %v84
    %199 = vmatpush1.msra.mxu0 %v83
    %200 = vmatprep.subr.mxu0 %v80
    %201 = vmatpush1.msra.mxu0 %v79
    %202 = vmatprep.subr.mxu0 %v76
    %203 = vmatpush1.msra.mxu0 %v75
    %204 = vmatprep.subr.mxu0 %v72
    %205 = vmatpush1.msra.mxu0 %v71
    %206 = vmatprep.subr.mxu0 %v68
    %207 = vmatpush1.msra.mxu0 %v67
    %208 = vmatprep.subr.mxu0 %v64
    %209 = vmatpush1.msra.mxu0 %v63
    %210 = vmatprep.subr.mxu0 %v60
    %211 = vmatpush1.msra.mxu0 %v59
    %212 = vmatprep.subr.mxu0 %v56
    %213 = vmatpush1.msra.mxu0 %v55
    %214 = vmatprep.subr.mxu0 %v52
    %215 = vmatpush1.msra.mxu0 %v51
    %216 = vmatprep.subr.mxu0 %v48
    %217 = vmatpush1.msra.mxu0 %v47
    %218 = vmatprep.subr.mxu0 0.0
    %219 = vmatpush2.msra.mxu0 0.0
    %220 = vmatprep.subr.mxu0 0.0
    %221 = vmatpush2.msra.mxu0 0.0
    %222 = vmatprep.subr.mxu0 0.0
    %223 = vmatpush2.msra.mxu0 0.0
    %224 = vmatprep.subr.mxu0 0.0
    %225 = vmatpush2.msra.mxu0 0.0
    %226 = vmatprep.subr.mxu0 0.0
    %227 = vmatpush2.msra.mxu0 0.0
    %228 = vmatprep.subr.mxu0 0.0
    %229 = vmatpush2.msra.mxu0 0.0
    %230 = vmatprep.subr.mxu0 0.0
    %231 = vmatpush2.msra.mxu0 0.0
    %232 = vmatprep.subr.mxu0 0.0
    %233 = vmatpush2.msra.mxu0 0.0
    %234 = vmatprep.subr.mxu0 0.0
    %235 = vmatpush2.msra.mxu0 0.0
    %236 = vmatprep.subr.mxu0 0.0
    %237 = vmatpush2.msra.mxu0 0.0
    %238 = vmatprep.subr.mxu0 0.0
    %239 = vmatpush2.msra.mxu0 0.0
    %240 = vmatprep.subr.mxu0 0.0
    %241 = vmatpush2.msra.mxu0 0.0
    %242 = vmatprep.subr.mxu0 0.0
    %243 = vmatpush2.msra.mxu0 0.0
    %244 = vmatprep.subr.mxu0 0.0
    %245 = vmatpush2.msra.mxu0 0.0
    %246 = vmatprep.subr.mxu0 0.0
    %247 = vmatpush2.msra.mxu0 0.0
    %248 = vmatprep.subr.mxu0 0.0
    %249 = vmatpush2.msra.mxu0 0.0
    %250 = vmatprep.mubr.f32.mxu0 0.0
    %251 = vmatmul.mubr.f32.gmra.mxu0 %v109
    %v252 = vpop.f32.mrf.mxu0
    %v253 = vadd.f32 0.0, %v252
    %v254 = vpop.f32.mrf.mxu0
    %v255 = vadd.f32 0.0, %v254
    %256 = vdwg.mxu0
    %v257 = vadd.f32 %v111, %v182
    %v258 = vadd.f32 %v112, %v184
    %v259 = vadd.f32 %v113, %v253
    %v260 = vadd.f32 %v114, %v255
    %v261 = vxor.u32 %v257, 2147483648
    %v262 = vxor.u32 %v258, 2147483648
    %v263 = vxor.u32 %v259, 2147483648
    %v264 = vmul.f32 %v261, 1.442695
    %v265 = vpow.pop %v264
    %v266 = vmul.f32 %v262, 1.442695
    %v267 = vpow.pop %v266
    %v268 = vmul.f32 %v263, 1.442695
    %v269 = vpow.pop %v268
    %v270 = vadd.f32 %v265, 1.0
    %v271 = vadd.f32 %v267, 1.0
    %v272 = vadd.f32 %v269, 1.0
    %v273 = vrcp.pop %v270
    %v274 = vmul.f32 1.0, %v273
    %v275 = vrcp.pop %v271
    %v276 = vmul.f32 1.0, %v275
    %v277 = vrcp.pop %v272
    %v278 = vmul.f32 1.0, %v277
    %v279 = vtanh.pop %v260
    %v280 = vmul.f32 %v276, %v110
    %v281 = vmul.f32 %v274, %v279
    %v282 = vadd.f32 %v280, %v281
    %v283 = vtanh.pop %v282
    %v284 = vmul.f32 %v278, %v283
    %285 = vmatprep.subr.mxu0 %v106
    %286 = vmatpush1.msra.mxu0 %v105
    %287 = vmatprep.subr.mxu0 %v102
    %288 = vmatpush1.msra.mxu0 %v101
    %289 = vmatprep.subr.mxu0 %v98
    %290 = vmatpush1.msra.mxu0 %v97
    %291 = vmatprep.subr.mxu0 %v94
    %292 = vmatpush1.msra.mxu0 %v93
    %293 = vmatprep.subr.mxu0 %v90
    %294 = vmatpush1.msra.mxu0 %v89
    %295 = vmatprep.subr.mxu0 %v86
    %296 = vmatpush1.msra.mxu0 %v85
    %297 = vmatprep.subr.mxu0 %v82
    %298 = vmatpush1.msra.mxu0 %v81
    %299 = vmatprep.subr.mxu0 %v78
    %300 = vmatpush1.msra.mxu0 %v77
    %301 = vmatprep.subr.mxu0 %v74
    %302 = vmatpush1.msra.mxu0 %v73
    %303 = vmatprep.subr.mxu0 %v70
    %304 = vmatpush1.msra.mxu0 %v69
    %305 = vmatprep.subr.mxu0 %v66
    %306 = vmatpush1.msra.mxu0 %v65
    %307 = vmatprep.subr.mxu0 %v62
    %308 = vmatpush1.msra.mxu0 %v61
    %309 = vmatprep.subr.mxu0 %v58
    %310 = vmatpush1.msra.mxu0 %v57
    %311 = vmatprep.subr.mxu0 %v54
    %312 = vmatpush1.msra.mxu0 %v53
    %313 = vmatprep.subr.mxu0 %v50
    %314 = vmatpush1.msra.mxu0 %v49
    %315 = vmatprep.subr.mxu0 %v46
    %316 = vmatpush1.msra.mxu0 %v45
    %317 = vmatprep.subr.mxu0 0.0
    %318 = vmatpush2.msra.mxu0 0.0
    %319 = vmatprep.subr.mxu0 0.0
    %320 = vmatpush2.msra.mxu0 0.0
    %321 = vmatprep.subr.mxu0 0.0
    %322 = vmatpush2.msra.mxu0 0.0
    %323 = vmatprep.subr.mxu0 0.0
    %324 = vmatpush2.msra.mxu0 0.0
    %325 = vmatprep.subr.mxu0 0.0
    %326 = vmatpush2.msra.mxu0 0.0
    %327 = vmatprep.subr.mxu0 0.0
    %328 = vmatpush2.msra.mxu0 0.0
    %329 = vmatprep.subr.mxu0 0.0
    %330 = vmatpush2.msra.mxu0 0.0
    %331 = vmatprep.subr.mxu0 0.0
    %332 = vmatpush2.msra.mxu0 0.0
    %333 = vmatprep.subr.mxu0 0.0
    %334 = vmatpush2.msra.mxu0 0.0
    %335 = vmatprep.subr.mxu0 0.0
    %336 = vmatpush2.msra.mxu0 0.0
    %337 = vmatprep.subr.mxu0 0.0
    %338 = vmatpush2.msra.mxu0 0.0
    %339 = vmatprep.subr.mxu0 0.0
    %340 = vmatpush2.msra.mxu0 0.0
    %341 = vmatprep.subr.mxu0 0.0
    %342 = vmatpush2.msra.mxu0 0.0
    %343 = vmatprep.subr.mxu0 0.0
    %344 = vmatpush2.msra.mxu0 0.0
    %345 = vmatprep.subr.mxu0 0.0
    %346 = vmatpush2.msra.mxu0 0.0
    %347 = vmatprep.subr.mxu0 0.0
    %348 = vmatpush2.msra.mxu0 0.0
    %349 = vmatprep.mubr.f32.mxu0 0.0
    %350 = vmatmul.mubr.f32.gmra.mxu0 %v284
    %v351 = vpop.f32.mrf.mxu0
    %v352 = vadd.f32 0.0, %v351
    %v353 = vpop.f32.mrf.mxu0
    %v354 = vadd.f32 0.0, %v353
    %355 = vdwg.mxu0
    %356 = vmatprep.subr.mxu0 %v108
    %357 = vmatpush1.msra.mxu0 %v107
    %358 = vmatprep.subr.mxu0 %v104
    %359 = vmatpush1.msra.mxu0 %v103
    %360 = vmatprep.subr.mxu0 %v100
    %361 = vmatpush1.msra.mxu0 %v99
    %362 = vmatprep.subr.mxu0 %v96
    %363 = vmatpush1.msra.mxu0 %v95
    %364 = vmatprep.subr.mxu0 %v92
    %365 = vmatpush1.msra.mxu0 %v91
    %366 = vmatprep.subr.mxu0 %v88
    %367 = vmatpush1.msra.mxu0 %v87
    %368 = vmatprep.subr.mxu0 %v84
    %369 = vmatpush1.msra.mxu0 %v83
    %370 = vmatprep.subr.mxu0 %v80
    %371 = vmatpush1.msra.mxu0 %v79
    %372 = vmatprep.subr.mxu0 %v76
    %373 = vmatpush1.msra.mxu0 %v75
    %374 = vmatprep.subr.mxu0 %v72
    %375 = vmatpush1.msra.mxu0 %v71
    %376 = vmatprep.subr.mxu0 %v68
    %377 = vmatpush1.msra.mxu0 %v67
    %378 = vmatprep.subr.mxu0 %v64
    %379 = vmatpush1.msra.mxu0 %v63
    %380 = vmatprep.subr.mxu0 %v60
    %381 = vmatpush1.msra.mxu0 %v59
    %382 = vmatprep.subr.mxu0 %v56
    %383 = vmatpush1.msra.mxu0 %v55
    %384 = vmatprep.subr.mxu0 %v52
    %385 = vmatpush1.msra.mxu0 %v51
    %386 = vmatprep.subr.mxu0 %v48
    %387 = vmatpush1.msra.mxu0 %v47
    %388 = vmatprep.subr.mxu0 0.0
    %389 = vmatpush2.msra.mxu0 0.0
    %390 = vmatprep.subr.mxu0 0.0
    %391 = vmatpush2.msra.mxu0 0.0
    %392 = vmatprep.subr.mxu0 0.0
    %393 = vmatpush2.msra.mxu0 0.0
    %394 = vmatprep.subr.mxu0 0.0
    %395 = vmatpush2.msra.mxu0 0.0
    %396 = vmatprep.subr.mxu0 0.0
    %397 = vmatpush2.msra.mxu0 0.0
    %398 = vmatprep.subr.mxu0 0.0
    %399 = vmatpush2.msra.mxu0 0.0
    %400 = vmatprep.subr.mxu0 0.0
    %401 = vmatpush2.msra.mxu0 0.0
    %402 = vmatprep.subr.mxu0 0.0
    %403 = vmatpush2.msra.mxu0 0.0
    %404 = vmatprep.subr.mxu0 0.0
    %405 = vmatpush2.msra.mxu0 0.0
    %406 = vmatprep.subr.mxu0 0.0
    %407 = vmatpush2.msra.mxu0 0.0
    %408 = vmatprep.subr.mxu0 0.0
    %409 = vmatpush2.msra.mxu0 0.0
    %410 = vmatprep.subr.mxu0 0.0
    %411 = vmatpush2.msra.mxu0 0.0
    %412 = vmatprep.subr.mxu0 0.0
    %413 = vmatpush2.msra.mxu0 0.0
    %414 = vmatprep.subr.mxu0 0.0
    %415 = vmatpush2.msra.mxu0 0.0
    %416 = vmatprep.subr.mxu0 0.0
    %417 = vmatpush2.msra.mxu0 0.0
    %418 = vmatprep.subr.mxu0 0.0
    %419 = vmatpush2.msra.mxu0 0.0
    %420 = vmatprep.mubr.f32.mxu0 0.0
    %421 = vmatmul.mubr.f32.gmra.mxu0 %v284
    %v422 = vpop.f32.mrf.mxu0
    %v423 = vadd.f32 0.0, %v422
    %v424 = vpop.f32.mrf.mxu0
    %v425 = vadd.f32 0.0, %v424
    %426 = vdwg.mxu0
    %v431 = vrot.slane %v352, 6
    %v432 = vrot.slane %v354, 6
    %v433 = vrot.slane %v423, 6
    %v434 = vrot.slane %v425, 6
    %v439 = vadd.f32 %v111, %v431
    %v440 = vadd.f32 %v112, %v432
    %v441 = vadd.f32 %v113, %v433
    %v442 = vadd.f32 %v114, %v434
    %v443 = vxor.u32 %v439, 2147483648
    %v444 = vxor.u32 %v440, 2147483648
    %v445 = vxor.u32 %v441, 2147483648
    %v446 = vmul.f32 %v443, 1.442695
    %v447 = vpow.pop %v446
    %v448 = vmul.f32 %v444, 1.442695
    %v449 = vpow.pop %v448
    %v450 = vmul.f32 %v445, 1.442695
    %v451 = vpow.pop %v450
    %v452 = vadd.f32 %v447, 1.0
    %v453 = vadd.f32 %v449, 1.0
    %v454 = vadd.f32 %v451, 1.0
    %v455 = vrcp.pop %v452
    %v456 = vmul.f32 1.0, %v455
    %v457 = vrcp.pop %v453
    %v458 = vmul.f32 1.0, %v457
    %v459 = vrcp.pop %v454
    %v460 = vmul.f32 1.0, %v459
    %v461 = vtanh.pop %v442
    %v463 = vrot.slane %v282, 6
    %v465 = vmul.f32 %v458, %v463
    %v466 = vmul.f32 %v456, %v461
    %v467 = vadd.f32 %v465, %v466
    %v468 = vtanh.pop %v467
    %v469 = vmul.f32 %v460, %v468
    %v471 = vrot.slane %v469, 2
    %473 = vmatprep.subr.mxu0 %v106
    %474 = vmatpush1.msra.mxu0 %v105
    %475 = vmatprep.subr.mxu0 %v102
    %476 = vmatpush1.msra.mxu0 %v101
    %477 = vmatprep.subr.mxu0 %v98
    %478 = vmatpush1.msra.mxu0 %v97
    %479 = vmatprep.subr.mxu0 %v94
    %480 = vmatpush1.msra.mxu0 %v93
    %481 = vmatprep.subr.mxu0 %v90
    %482 = vmatpush1.msra.mxu0 %v89
    %483 = vmatprep.subr.mxu0 %v86
    %484 = vmatpush1.msra.mxu0 %v85
    %485 = vmatprep.subr.mxu0 %v82
    %486 = vmatpush1.msra.mxu0 %v81
    %487 = vmatprep.subr.mxu0 %v78
    %488 = vmatpush1.msra.mxu0 %v77
    %489 = vmatprep.subr.mxu0 %v74
    %490 = vmatpush1.msra.mxu0 %v73
    %491 = vmatprep.subr.mxu0 %v70
    %492 = vmatpush1.msra.mxu0 %v69
    %493 = vmatprep.subr.mxu0 %v66
    %494 = vmatpush1.msra.mxu0 %v65
    %495 = vmatprep.subr.mxu0 %v62
    %496 = vmatpush1.msra.mxu0 %v61
    %497 = vmatprep.subr.mxu0 %v58
    %498 = vmatpush1.msra.mxu0 %v57
    %499 = vmatprep.subr.mxu0 %v54
    %500 = vmatpush1.msra.mxu0 %v53
    %501 = vmatprep.subr.mxu0 %v50
    %502 = vmatpush1.msra.mxu0 %v49
    %503 = vmatprep.subr.mxu0 %v46
    %504 = vmatpush1.msra.mxu0 %v45
    %505 = vmatprep.subr.mxu0 0.0
    %506 = vmatpush2.msra.mxu0 0.0
    %507 = vmatprep.subr.mxu0 0.0
    %508 = vmatpush2.msra.mxu0 0.0
    %509 = vmatprep.subr.mxu0 0.0
    %510 = vmatpush2.msra.mxu0 0.0
    %511 = vmatprep.subr.mxu0 0.0
    %512 = vmatpush2.msra.mxu0 0.0
    %513 = vmatprep.subr.mxu0 0.0
    %514 = vmatpush2.msra.mxu0 0.0
    %515 = vmatprep.subr.mxu0 0.0
    %516 = vmatpush2.msra.mxu0 0.0
    %517 = vmatprep.subr.mxu0 0.0
    %518 = vmatpush2.msra.mxu0 0.0
    %519 = vmatprep.subr.mxu0 0.0
    %520 = vmatpush2.msra.mxu0 0.0
    %521 = vmatprep.subr.mxu0 0.0
    %522 = vmatpush2.msra.mxu0 0.0
    %523 = vmatprep.subr.mxu0 0.0
    %524 = vmatpush2.msra.mxu0 0.0
    %525 = vmatprep.subr.mxu0 0.0
    %526 = vmatpush2.msra.mxu0 0.0
    %527 = vmatprep.subr.mxu0 0.0
    %528 = vmatpush2.msra.mxu0 0.0
    %529 = vmatprep.subr.mxu0 0.0
    %530 = vmatpush2.msra.mxu0 0.0
    %531 = vmatprep.subr.mxu0 0.0
    %532 = vmatpush2.msra.mxu0 0.0
    %533 = vmatprep.subr.mxu0 0.0
    %534 = vmatpush2.msra.mxu0 0.0
    %535 = vmatprep.subr.mxu0 0.0
    %536 = vmatpush2.msra.mxu0 0.0
    %537 = vmatprep.mubr.f32.mxu0 0.0
    %538 = vmatmul.mubr.f32.gmra.mxu0 %v471
    %v539 = vpop.f32.mrf.mxu0
    %v540 = vadd.f32 0.0, %v539
    %v541 = vpop.f32.mrf.mxu0
    %v542 = vadd.f32 0.0, %v541
    %543 = vdwg.mxu0
    %544 = vmatprep.subr.mxu0 %v108
    %545 = vmatpush1.msra.mxu0 %v107
    %546 = vmatprep.subr.mxu0 %v104
    %547 = vmatpush1.msra.mxu0 %v103
    %548 = vmatprep.subr.mxu0 %v100
    %549 = vmatpush1.msra.mxu0 %v99
    %550 = vmatprep.subr.mxu0 %v96
    %551 = vmatpush1.msra.mxu0 %v95
    %552 = vmatprep.subr.mxu0 %v92
    %553 = vmatpush1.msra.mxu0 %v91
    %554 = vmatprep.subr.mxu0 %v88
    %555 = vmatpush1.msra.mxu0 %v87
    %556 = vmatprep.subr.mxu0 %v84
    %557 = vmatpush1.msra.mxu0 %v83
    %558 = vmatprep.subr.mxu0 %v80
    %559 = vmatpush1.msra.mxu0 %v79
    %560 = vmatprep.subr.mxu0 %v76
    %561 = vmatpush1.msra.mxu0 %v75
    %562 = vmatprep.subr.mxu0 %v72
    %563 = vmatpush1.msra.mxu0 %v71
    %564 = vmatprep.subr.mxu0 %v68
    %565 = vmatpush1.msra.mxu0 %v67
    %566 = vmatprep.subr.mxu0 %v64
    %567 = vmatpush1.msra.mxu0 %v63
    %568 = vmatprep.subr.mxu0 %v60
    %569 = vmatpush1.msra.mxu0 %v59
    %570 = vmatprep.subr.mxu0 %v56
    %571 = vmatpush1.msra.mxu0 %v55
    %572 = vmatprep.subr.mxu0 %v52
    %573 = vmatpush1.msra.mxu0 %v51
    %574 = vmatprep.subr.mxu0 %v48
    %575 = vmatpush1.msra.mxu0 %v47
    %576 = vmatprep.subr.mxu0 0.0
    %577 = vmatpush2.msra.mxu0 0.0
    %578 = vmatprep.subr.mxu0 0.0
    %579 = vmatpush2.msra.mxu0 0.0
    %580 = vmatprep.subr.mxu0 0.0
    %581 = vmatpush2.msra.mxu0 0.0
    %582 = vmatprep.subr.mxu0 0.0
    %583 = vmatpush2.msra.mxu0 0.0
    %584 = vmatprep.subr.mxu0 0.0
    %585 = vmatpush2.msra.mxu0 0.0
    %586 = vmatprep.subr.mxu0 0.0
    %587 = vmatpush2.msra.mxu0 0.0
    %588 = vmatprep.subr.mxu0 0.0
    %589 = vmatpush2.msra.mxu0 0.0
    %590 = vmatprep.subr.mxu0 0.0
    %591 = vmatpush2.msra.mxu0 0.0
    %592 = vmatprep.subr.mxu0 0.0
    %593 = vmatpush2.msra.mxu0 0.0
    %594 = vmatprep.subr.mxu0 0.0
    %595 = vmatpush2.msra.mxu0 0.0
    %596 = vmatprep.subr.mxu0 0.0
    %597 = vmatpush2.msra.mxu0 0.0
    %598 = vmatprep.subr.mxu0 0.0
    %599 = vmatpush2.msra.mxu0 0.0
    %600 = vmatprep.subr.mxu0 0.0
    %601 = vmatpush2.msra.mxu0 0.0
    %602 = vmatprep.subr.mxu0 0.0
    %603 = vmatpush2.msra.mxu0 0.0
    %604 = vmatprep.subr.mxu0 0.0
    %605 = vmatpush2.msra.mxu0 0.0
    %606 = vmatprep.subr.mxu0 0.0
    %607 = vmatpush2.msra.mxu0 0.0
    %608 = vmatprep.mubr.f32.mxu0 0.0
    %609 = vmatmul.mubr.f32.gmra.mxu0 %v471
    %v610 = vpop.f32.mrf.mxu0
    %v611 = vadd.f32 0.0, %v610
    %v612 = vpop.f32.mrf.mxu0
    %v613 = vadd.f32 0.0, %v612
    %614 = vdwg.mxu0
    %v619 = vrot.slane %v540, 4
    %v620 = vrot.slane %v542, 4
    %v621 = vrot.slane %v611, 4
    %v622 = vrot.slane %v613, 4
    %v627 = vadd.f32 %v111, %v619
    %v628 = vadd.f32 %v112, %v620
    %v629 = vadd.f32 %v113, %v621
    %v630 = vadd.f32 %v114, %v622
    %v631 = vxor.u32 %v627, 2147483648
    %v632 = vxor.u32 %v628, 2147483648
    %v633 = vxor.u32 %v629, 2147483648
    %v634 = vmul.f32 %v631, 1.442695
    %v635 = vpow.pop %v634
    %v636 = vmul.f32 %v632, 1.442695
    %v637 = vpow.pop %v636
    %v638 = vmul.f32 %v633, 1.442695
    %v639 = vpow.pop %v638
    %v640 = vadd.f32 %v635, 1.0
    %v641 = vadd.f32 %v637, 1.0
    %v642 = vadd.f32 %v639, 1.0
    %v643 = vrcp.pop %v640
    %v644 = vmul.f32 1.0, %v643
    %v645 = vrcp.pop %v641
    %v646 = vmul.f32 1.0, %v645
    %v647 = vrcp.pop %v642
    %v648 = vmul.f32 1.0, %v647
    %v649 = vtanh.pop %v630
    %v651 = vrot.slane %v467, 6
    %v653 = vmul.f32 %v646, %v651
    %v654 = vmul.f32 %v644, %v649
    %v655 = vadd.f32 %v653, %v654
    %v656 = vtanh.pop %v655
    %v657 = vmul.f32 %v648, %v656
    %v659 = vrot.slane %v657, 4
    %661 = vmatprep.subr.mxu0 %v106
    %662 = vmatpush1.msra.mxu0 %v105
    %663 = vmatprep.subr.mxu0 %v102
    %664 = vmatpush1.msra.mxu0 %v101
    %665 = vmatprep.subr.mxu0 %v98
    %666 = vmatpush1.msra.mxu0 %v97
    %667 = vmatprep.subr.mxu0 %v94
    %668 = vmatpush1.msra.mxu0 %v93
    %669 = vmatprep.subr.mxu0 %v90
    %670 = vmatpush1.msra.mxu0 %v89
    %671 = vmatprep.subr.mxu0 %v86
    %672 = vmatpush1.msra.mxu0 %v85
    %673 = vmatprep.subr.mxu0 %v82
    %674 = vmatpush1.msra.mxu0 %v81
    %675 = vmatprep.subr.mxu0 %v78
    %676 = vmatpush1.msra.mxu0 %v77
    %677 = vmatprep.subr.mxu0 %v74
    %678 = vmatpush1.msra.mxu0 %v73
    %679 = vmatprep.subr.mxu0 %v70
    %680 = vmatpush1.msra.mxu0 %v69
    %681 = vmatprep.subr.mxu0 %v66
    %682 = vmatpush1.msra.mxu0 %v65
    %683 = vmatprep.subr.mxu0 %v62
    %684 = vmatpush1.msra.mxu0 %v61
    %685 = vmatprep.subr.mxu0 %v58
    %686 = vmatpush1.msra.mxu0 %v57
    %687 = vmatprep.subr.mxu0 %v54
    %688 = vmatpush1.msra.mxu0 %v53
    %689 = vmatprep.subr.mxu0 %v50
    %690 = vmatpush1.msra.mxu0 %v49
    %691 = vmatprep.subr.mxu0 %v46
    %692 = vmatpush1.msra.mxu0 %v45
    %693 = vmatprep.subr.mxu0 0.0
    %694 = vmatpush2.msra.mxu0 0.0
    %695 = vmatprep.subr.mxu0 0.0
    %696 = vmatpush2.msra.mxu0 0.0
    %697 = vmatprep.subr.mxu0 0.0
    %698 = vmatpush2.msra.mxu0 0.0
    %699 = vmatprep.subr.mxu0 0.0
    %700 = vmatpush2.msra.mxu0 0.0
    %701 = vmatprep.subr.mxu0 0.0
    %702 = vmatpush2.msra.mxu0 0.0
    %703 = vmatprep.subr.mxu0 0.0
    %704 = vmatpush2.msra.mxu0 0.0
    %705 = vmatprep.subr.mxu0 0.0
    %706 = vmatpush2.msra.mxu0 0.0
    %707 = vmatprep.subr.mxu0 0.0
    %708 = vmatpush2.msra.mxu0 0.0
    %709 = vmatprep.subr.mxu0 0.0
    %710 = vmatpush2.msra.mxu0 0.0
    %711 = vmatprep.subr.mxu0 0.0
    %712 = vmatpush2.msra.mxu0 0.0
    %713 = vmatprep.subr.mxu0 0.0
    %714 = vmatpush2.msra.mxu0 0.0
    %715 = vmatprep.subr.mxu0 0.0
    %716 = vmatpush2.msra.mxu0 0.0
    %717 = vmatprep.subr.mxu0 0.0
    %718 = vmatpush2.msra.mxu0 0.0
    %719 = vmatprep.subr.mxu0 0.0
    %720 = vmatpush2.msra.mxu0 0.0
    %721 = vmatprep.subr.mxu0 0.0
    %722 = vmatpush2.msra.mxu0 0.0
    %723 = vmatprep.subr.mxu0 0.0
    %724 = vmatpush2.msra.mxu0 0.0
    %725 = vmatprep.mubr.f32.mxu0 0.0
    %726 = vmatmul.mubr.f32.gmra.mxu0 %v659
    %v727 = vpop.f32.mrf.mxu0
    %v728 = vadd.f32 0.0, %v727
    %v729 = vpop.f32.mrf.mxu0
    %v730 = vadd.f32 0.0, %v729
    %731 = vdwg.mxu0
    %732 = vmatprep.subr.mxu0 %v108
    %733 = vmatpush1.msra.mxu0 %v107
    %734 = vmatprep.subr.mxu0 %v104
    %735 = vmatpush1.msra.mxu0 %v103
    %736 = vmatprep.subr.mxu0 %v100
    %737 = vmatpush1.msra.mxu0 %v99
    %738 = vmatprep.subr.mxu0 %v96
    %739 = vmatpush1.msra.mxu0 %v95
    %740 = vmatprep.subr.mxu0 %v92
    %741 = vmatpush1.msra.mxu0 %v91
    %742 = vmatprep.subr.mxu0 %v88
    %743 = vmatpush1.msra.mxu0 %v87
    %744 = vmatprep.subr.mxu0 %v84
    %745 = vmatpush1.msra.mxu0 %v83
    %746 = vmatprep.subr.mxu0 %v80
    %747 = vmatpush1.msra.mxu0 %v79
    %748 = vmatprep.subr.mxu0 %v76
    %749 = vmatpush1.msra.mxu0 %v75
    %750 = vmatprep.subr.mxu0 %v72
    %751 = vmatpush1.msra.mxu0 %v71
    %752 = vmatprep.subr.mxu0 %v68
    %753 = vmatpush1.msra.mxu0 %v67
    %754 = vmatprep.subr.mxu0 %v64
    %755 = vmatpush1.msra.mxu0 %v63
    %756 = vmatprep.subr.mxu0 %v60
    %757 = vmatpush1.msra.mxu0 %v59
    %758 = vmatprep.subr.mxu0 %v56
    %759 = vmatpush1.msra.mxu0 %v55
    %760 = vmatprep.subr.mxu0 %v52
    %761 = vmatpush1.msra.mxu0 %v51
    %762 = vmatprep.subr.mxu0 %v48
    %763 = vmatpush1.msra.mxu0 %v47
    %764 = vmatprep.subr.mxu0 0.0
    %765 = vmatpush2.msra.mxu0 0.0
    %766 = vmatprep.subr.mxu0 0.0
    %767 = vmatpush2.msra.mxu0 0.0
    %768 = vmatprep.subr.mxu0 0.0
    %769 = vmatpush2.msra.mxu0 0.0
    %770 = vmatprep.subr.mxu0 0.0
    %771 = vmatpush2.msra.mxu0 0.0
    %772 = vmatprep.subr.mxu0 0.0
    %773 = vmatpush2.msra.mxu0 0.0
    %774 = vmatprep.subr.mxu0 0.0
    %775 = vmatpush2.msra.mxu0 0.0
    %776 = vmatprep.subr.mxu0 0.0
    %777 = vmatpush2.msra.mxu0 0.0
    %778 = vmatprep.subr.mxu0 0.0
    %779 = vmatpush2.msra.mxu0 0.0
    %780 = vmatprep.subr.mxu0 0.0
    %781 = vmatpush2.msra.mxu0 0.0
    %782 = vmatprep.subr.mxu0 0.0
    %783 = vmatpush2.msra.mxu0 0.0
    %784 = vmatprep.subr.mxu0 0.0
    %785 = vmatpush2.msra.mxu0 0.0
    %786 = vmatprep.subr.mxu0 0.0
    %787 = vmatpush2.msra.mxu0 0.0
    %788 = vmatprep.subr.mxu0 0.0
    %789 = vmatpush2.msra.mxu0 0.0
    %790 = vmatprep.subr.mxu0 0.0
    %791 = vmatpush2.msra.mxu0 0.0
    %792 = vmatprep.subr.mxu0 0.0
    %793 = vmatpush2.msra.mxu0 0.0
    %794 = vmatprep.subr.mxu0 0.0
    %795 = vmatpush2.msra.mxu0 0.0
    %796 = vmatprep.mubr.f32.mxu0 0.0
    %797 = vmatmul.mubr.f32.gmra.mxu0 %v659
    %v798 = vpop.f32.mrf.mxu0
    %v799 = vadd.f32 0.0, %v798
    %v800 = vpop.f32.mrf.mxu0
    %v801 = vadd.f32 0.0, %v800
    %802 = vdwg.mxu0
    %v807 = vrot.slane %v728, 2
    %v808 = vrot.slane %v730, 2
    %v809 = vrot.slane %v799, 2
    %v810 = vrot.slane %v801, 2
    %v815 = vadd.f32 %v111, %v807
    %v816 = vadd.f32 %v112, %v808
    %v817 = vadd.f32 %v113, %v809
    %v818 = vadd.f32 %v114, %v810
    %v819 = vxor.u32 %v815, 2147483648
    %v820 = vxor.u32 %v816, 2147483648
    %v821 = vxor.u32 %v817, 2147483648
    %v822 = vmul.f32 %v819, 1.442695
    %v823 = vpow.pop %v822
    %v824 = vmul.f32 %v820, 1.442695
    %v825 = vpow.pop %v824
    %v826 = vmul.f32 %v821, 1.442695
    %v827 = vpow.pop %v826
    %v828 = vadd.f32 %v823, 1.0
    %v829 = vadd.f32 %v825, 1.0
    %v830 = vadd.f32 %v827, 1.0
    %v831 = vrcp.pop %v828
    %v832 = vmul.f32 1.0, %v831
    %v833 = vrcp.pop %v829
    %v834 = vmul.f32 1.0, %v833
    %v835 = vrcp.pop %v830
    %v836 = vmul.f32 1.0, %v835
    %v837 = vtanh.pop %v818
    %v839 = vrot.slane %v655, 6
    %v841 = vmul.f32 %v834, %v839
    %v842 = vmul.f32 %v832, %v837
    %v843 = vadd.f32 %v841, %v842
    %v844 = vtanh.pop %v843
    %v845 = vmul.f32 %v836, %v844
    %s846 = scalar_lea.vmem [#allocation6], 32
    %v847 = vld [vmem:[%s846] sm:$0xff]
    %v848 = vld [vmem:[%s846 + $0x8] sm:$0xff]
    %v849 = vld [vmem:[%s846 + $0x10] sm:$0xff]
    %v850 = vld [vmem:[%s846 + $0x18] sm:$0xff]
    %v852 = vrot.slane %v845, 6
    %854 = vmatprep.subr.mxu0 %v106
    %855 = vmatpush1.msra.mxu0 %v105
    %856 = vmatprep.subr.mxu0 %v102
    %857 = vmatpush1.msra.mxu0 %v101
    %858 = vmatprep.subr.mxu0 %v98
    %859 = vmatpush1.msra.mxu0 %v97
    %860 = vmatprep.subr.mxu0 %v94
    %861 = vmatpush1.msra.mxu0 %v93
    %862 = vmatprep.subr.mxu0 %v90
    %863 = vmatpush1.msra.mxu0 %v89
    %864 = vmatprep.subr.mxu0 %v86
    %865 = vmatpush1.msra.mxu0 %v85
    %866 = vmatprep.subr.mxu0 %v82
    %867 = vmatpush1.msra.mxu0 %v81
    %868 = vmatprep.subr.mxu0 %v78
    %869 = vmatpush1.msra.mxu0 %v77
    %870 = vmatprep.subr.mxu0 %v74
    %871 = vmatpush1.msra.mxu0 %v73
    %872 = vmatprep.subr.mxu0 %v70
    %873 = vmatpush1.msra.mxu0 %v69
    %874 = vmatprep.subr.mxu0 %v66
    %875 = vmatpush1.msra.mxu0 %v65
    %876 = vmatprep.subr.mxu0 %v62
    %877 = vmatpush1.msra.mxu0 %v61
    %878 = vmatprep.subr.mxu0 %v58
    %879 = vmatpush1.msra.mxu0 %v57
    %880 = vmatprep.subr.mxu0 %v54
    %881 = vmatpush1.msra.mxu0 %v53
    %882 = vmatprep.subr.mxu0 %v50
    %883 = vmatpush1.msra.mxu0 %v49
    %884 = vmatprep.subr.mxu0 %v46
    %885 = vmatpush1.msra.mxu0 %v45
    %886 = vmatprep.subr.mxu0 0.0
    %887 = vmatpush2.msra.mxu0 0.0
    %888 = vmatprep.subr.mxu0 0.0
    %889 = vmatpush2.msra.mxu0 0.0
    %890 = vmatprep.subr.mxu0 0.0
    %891 = vmatpush2.msra.mxu0 0.0
    %892 = vmatprep.subr.mxu0 0.0
    %893 = vmatpush2.msra.mxu0 0.0
    %894 = vmatprep.subr.mxu0 0.0
    %895 = vmatpush2.msra.mxu0 0.0
    %896 = vmatprep.subr.mxu0 0.0
    %897 = vmatpush2.msra.mxu0 0.0
    %898 = vmatprep.subr.mxu0 0.0
    %899 = vmatpush2.msra.mxu0 0.0
    %900 = vmatprep.subr.mxu0 0.0
    %901 = vmatpush2.msra.mxu0 0.0
    %902 = vmatprep.subr.mxu0 0.0
    %903 = vmatpush2.msra.mxu0 0.0
    %904 = vmatprep.subr.mxu0 0.0
    %905 = vmatpush2.msra.mxu0 0.0
    %906 = vmatprep.subr.mxu0 0.0
    %907 = vmatpush2.msra.mxu0 0.0
    %908 = vmatprep.subr.mxu0 0.0
    %909 = vmatpush2.msra.mxu0 0.0
    %910 = vmatprep.subr.mxu0 0.0
    %911 = vmatpush2.msra.mxu0 0.0
    %912 = vmatprep.subr.mxu0 0.0
    %913 = vmatpush2.msra.mxu0 0.0
    %914 = vmatprep.subr.mxu0 0.0
    %915 = vmatpush2.msra.mxu0 0.0
    %916 = vmatprep.subr.mxu0 0.0
    %917 = vmatpush2.msra.mxu0 0.0
    %918 = vmatprep.mubr.f32.mxu0 0.0
    %919 = vmatmul.mubr.f32.gmra.mxu0 %v852
    %v920 = vpop.f32.mrf.mxu0
    %v921 = vadd.f32 0.0, %v920
    %v922 = vpop.f32.mrf.mxu0
    %v923 = vadd.f32 0.0, %v922
    %924 = vdwg.mxu0
    %925 = vmatprep.subr.mxu0 %v108
    %926 = vmatpush1.msra.mxu0 %v107
    %927 = vmatprep.subr.mxu0 %v104
    %928 = vmatpush1.msra.mxu0 %v103
    %929 = vmatprep.subr.mxu0 %v100
    %930 = vmatpush1.msra.mxu0 %v99
    %931 = vmatprep.subr.mxu0 %v96
    %932 = vmatpush1.msra.mxu0 %v95
    %933 = vmatprep.subr.mxu0 %v92
    %934 = vmatpush1.msra.mxu0 %v91
    %935 = vmatprep.subr.mxu0 %v88
    %936 = vmatpush1.msra.mxu0 %v87
    %937 = vmatprep.subr.mxu0 %v84
    %938 = vmatpush1.msra.mxu0 %v83
    %939 = vmatprep.subr.mxu0 %v80
    %940 = vmatpush1.msra.mxu0 %v79
    %941 = vmatprep.subr.mxu0 %v76
    %942 = vmatpush1.msra.mxu0 %v75
    %943 = vmatprep.subr.mxu0 %v72
    %944 = vmatpush1.msra.mxu0 %v71
    %945 = vmatprep.subr.mxu0 %v68
    %946 = vmatpush1.msra.mxu0 %v67
    %947 = vmatprep.subr.mxu0 %v64
    %948 = vmatpush1.msra.mxu0 %v63
    %949 = vmatprep.subr.mxu0 %v60
    %950 = vmatpush1.msra.mxu0 %v59
    %951 = vmatprep.subr.mxu0 %v56
    %952 = vmatpush1.msra.mxu0 %v55
    %953 = vmatprep.subr.mxu0 %v52
    %954 = vmatpush1.msra.mxu0 %v51
    %955 = vmatprep.subr.mxu0 %v48
    %956 = vmatpush1.msra.mxu0 %v47
    %957 = vmatprep.subr.mxu0 0.0
    %958 = vmatpush2.msra.mxu0 0.0
    %959 = vmatprep.subr.mxu0 0.0
    %960 = vmatpush2.msra.mxu0 0.0
    %961 = vmatprep.subr.mxu0 0.0
    %962 = vmatpush2.msra.mxu0 0.0
    %963 = vmatprep.subr.mxu0 0.0
    %964 = vmatpush2.msra.mxu0 0.0
    %965 = vmatprep.subr.mxu0 0.0
    %966 = vmatpush2.msra.mxu0 0.0
    %967 = vmatprep.subr.mxu0 0.0
    %968 = vmatpush2.msra.mxu0 0.0
    %969 = vmatprep.subr.mxu0 0.0
    %970 = vmatpush2.msra.mxu0 0.0
    %971 = vmatprep.subr.mxu0 0.0
    %972 = vmatpush2.msra.mxu0 0.0
    %973 = vmatprep.subr.mxu0 0.0
    %974 = vmatpush2.msra.mxu0 0.0
    %975 = vmatprep.subr.mxu0 0.0
    %976 = vmatpush2.msra.mxu0 0.0
    %977 = vmatprep.subr.mxu0 0.0
    %978 = vmatpush2.msra.mxu0 0.0
    %979 = vmatprep.subr.mxu0 0.0
    %980 = vmatpush2.msra.mxu0 0.0
    %981 = vmatprep.subr.mxu0 0.0
    %982 = vmatpush2.msra.mxu0 0.0
    %983 = vmatprep.subr.mxu0 0.0
    %984 = vmatpush2.msra.mxu0 0.0
    %985 = vmatprep.subr.mxu0 0.0
    %986 = vmatpush2.msra.mxu0 0.0
    %987 = vmatprep.subr.mxu0 0.0
    %988 = vmatpush2.msra.mxu0 0.0
    %989 = vmatprep.mubr.f32.mxu0 0.0
    %990 = vmatmul.mubr.f32.gmra.mxu0 %v852
    %v991 = vpop.f32.mrf.mxu0
    %v992 = vadd.f32 0.0, %v991
    %v993 = vpop.f32.mrf.mxu0
    %v994 = vadd.f32 0.0, %v993
    %995 = vdwg.mxu0
    %v996 = vadd.f32 %v847, %v921
    %v997 = vadd.f32 %v848, %v923
    %v998 = vadd.f32 %v849, %v992
    %v999 = vadd.f32 %v850, %v994
    %v1000 = vxor.u32 %v996, 2147483648
    %v1001 = vxor.u32 %v997, 2147483648
    %v1002 = vxor.u32 %v998, 2147483648
    %v1003 = vmul.f32 %v1000, 1.442695
    %v1004 = vpow.pop %v1003
    %v1005 = vmul.f32 %v1001, 1.442695
    %v1006 = vpow.pop %v1005
    %v1007 = vmul.f32 %v1002, 1.442695
    %v1008 = vpow.pop %v1007
    %v1009 = vadd.f32 %v1004, 1.0
    %v1010 = vadd.f32 %v1006, 1.0
    %v1011 = vadd.f32 %v1008, 1.0
    %v1012 = vrcp.pop %v1009
    %v1013 = vmul.f32 1.0, %v1012
    %v1014 = vrcp.pop %v1010
    %v1015 = vmul.f32 1.0, %v1014
    %v1016 = vrcp.pop %v1011
    %v1017 = vmul.f32 1.0, %v1016
    %v1018 = vtanh.pop %v999
    %v1020 = vrot.slane %v843, 6
    %v1022 = vmul.f32 %v1015, %v1020
    %v1023 = vmul.f32 %v1013, %v1018
    %v1024 = vadd.f32 %v1022, %v1023
    %v1025 = vtanh.pop %v1024
    %v1026 = vmul.f32 %v1017, %v1025
    %1027 = vmatprep.subr.mxu0 %v106
    %1028 = vmatpush1.msra.mxu0 %v105
    %1029 = vmatprep.subr.mxu0 %v102
    %1030 = vmatpush1.msra.mxu0 %v101
    %1031 = vmatprep.subr.mxu0 %v98
    %1032 = vmatpush1.msra.mxu0 %v97
    %1033 = vmatprep.subr.mxu0 %v94
    %1034 = vmatpush1.msra.mxu0 %v93
    %1035 = vmatprep.subr.mxu0 %v90
    %1036 = vmatpush1.msra.mxu0 %v89
    %1037 = vmatprep.subr.mxu0 %v86
    %1038 = vmatpush1.msra.mxu0 %v85
    %1039 = vmatprep.subr.mxu0 %v82
    %1040 = vmatpush1.msra.mxu0 %v81
    %1041 = vmatprep.subr.mxu0 %v78
    %1042 = vmatpush1.msra.mxu0 %v77
    %1043 = vmatprep.subr.mxu0 %v74
    %1044 = vmatpush1.msra.mxu0 %v73
    %1045 = vmatprep.subr.mxu0 %v70
    %1046 = vmatpush1.msra.mxu0 %v69
    %1047 = vmatprep.subr.mxu0 %v66
    %1048 = vmatpush1.msra.mxu0 %v65
    %1049 = vmatprep.subr.mxu0 %v62
    %1050 = vmatpush1.msra.mxu0 %v61
    %1051 = vmatprep.subr.mxu0 %v58
    %1052 = vmatpush1.msra.mxu0 %v57
    %1053 = vmatprep.subr.mxu0 %v54
    %1054 = vmatpush1.msra.mxu0 %v53
    %1055 = vmatprep.subr.mxu0 %v50
    %1056 = vmatpush1.msra.mxu0 %v49
    %1057 = vmatprep.subr.mxu0 %v46
    %1058 = vmatpush1.msra.mxu0 %v45
    %1059 = vmatprep.subr.mxu0 0.0
    %1060 = vmatpush2.msra.mxu0 0.0
    %1061 = vmatprep.subr.mxu0 0.0
    %1062 = vmatpush2.msra.mxu0 0.0
    %1063 = vmatprep.subr.mxu0 0.0
    %1064 = vmatpush2.msra.mxu0 0.0
    %1065 = vmatprep.subr.mxu0 0.0
    %1066 = vmatpush2.msra.mxu0 0.0
    %1067 = vmatprep.subr.mxu0 0.0
    %1068 = vmatpush2.msra.mxu0 0.0
    %1069 = vmatprep.subr.mxu0 0.0
    %1070 = vmatpush2.msra.mxu0 0.0
    %1071 = vmatprep.subr.mxu0 0.0
    %1072 = vmatpush2.msra.mxu0 0.0
    %1073 = vmatprep.subr.mxu0 0.0
    %1074 = vmatpush2.msra.mxu0 0.0
    %1075 = vmatprep.subr.mxu0 0.0
    %1076 = vmatpush2.msra.mxu0 0.0
    %1077 = vmatprep.subr.mxu0 0.0
    %1078 = vmatpush2.msra.mxu0 0.0
    %1079 = vmatprep.subr.mxu0 0.0
    %1080 = vmatpush2.msra.mxu0 0.0
    %1081 = vmatprep.subr.mxu0 0.0
    %1082 = vmatpush2.msra.mxu0 0.0
    %1083 = vmatprep.subr.mxu0 0.0
    %1084 = vmatpush2.msra.mxu0 0.0
    %1085 = vmatprep.subr.mxu0 0.0
    %1086 = vmatpush2.msra.mxu0 0.0
    %1087 = vmatprep.subr.mxu0 0.0
    %1088 = vmatpush2.msra.mxu0 0.0
    %1089 = vmatprep.subr.mxu0 0.0
    %1090 = vmatpush2.msra.mxu0 0.0
    %1091 = vmatprep.mubr.f32.mxu0 0.0
    %1092 = vmatmul.mubr.f32.gmra.mxu0 %v1026
    %v1093 = vpop.f32.mrf.mxu0
    %v1094 = vadd.f32 0.0, %v1093
    %v1095 = vpop.f32.mrf.mxu0
    %v1096 = vadd.f32 0.0, %v1095
    %1097 = vdwg.mxu0
    %1098 = vmatprep.subr.mxu0 %v108
    %1099 = vmatpush1.msra.mxu0 %v107
    %1100 = vmatprep.subr.mxu0 %v104
    %1101 = vmatpush1.msra.mxu0 %v103
    %1102 = vmatprep.subr.mxu0 %v100
    %1103 = vmatpush1.msra.mxu0 %v99
    %1104 = vmatprep.subr.mxu0 %v96
    %1105 = vmatpush1.msra.mxu0 %v95
    %1106 = vmatprep.subr.mxu0 %v92
    %1107 = vmatpush1.msra.mxu0 %v91
    %1108 = vmatprep.subr.mxu0 %v88
    %1109 = vmatpush1.msra.mxu0 %v87
    %1110 = vmatprep.subr.mxu0 %v84
    %1111 = vmatpush1.msra.mxu0 %v83
    %1112 = vmatprep.subr.mxu0 %v80
    %1113 = vmatpush1.msra.mxu0 %v79
    %1114 = vmatprep.subr.mxu0 %v76
    %1115 = vmatpush1.msra.mxu0 %v75
    %1116 = vmatprep.subr.mxu0 %v72
    %1117 = vmatpush1.msra.mxu0 %v71
    %1118 = vmatprep.subr.mxu0 %v68
    %1119 = vmatpush1.msra.mxu0 %v67
    %1120 = vmatprep.subr.mxu0 %v64
    %1121 = vmatpush1.msra.mxu0 %v63
    %1122 = vmatprep.subr.mxu0 %v60
    %1123 = vmatpush1.msra.mxu0 %v59
    %1124 = vmatprep.subr.mxu0 %v56
    %1125 = vmatpush1.msra.mxu0 %v55
    %1126 = vmatprep.subr.mxu0 %v52
    %1127 = vmatpush1.msra.mxu0 %v51
    %1128 = vmatprep.subr.mxu0 %v48
    %1129 = vmatpush1.msra.mxu0 %v47
    %1130 = vmatprep.subr.mxu0 0.0
    %1131 = vmatpush2.msra.mxu0 0.0
    %1132 = vmatprep.subr.mxu0 0.0
    %1133 = vmatpush2.msra.mxu0 0.0
    %1134 = vmatprep.subr.mxu0 0.0
    %1135 = vmatpush2.msra.mxu0 0.0
    %1136 = vmatprep.subr.mxu0 0.0
    %1137 = vmatpush2.msra.mxu0 0.0
    %1138 = vmatprep.subr.mxu0 0.0
    %1139 = vmatpush2.msra.mxu0 0.0
    %1140 = vmatprep.subr.mxu0 0.0
    %1141 = vmatpush2.msra.mxu0 0.0
    %1142 = vmatprep.subr.mxu0 0.0
    %1143 = vmatpush2.msra.mxu0 0.0
    %1144 = vmatprep.subr.mxu0 0.0
    %1145 = vmatpush2.msra.mxu0 0.0
    %1146 = vmatprep.subr.mxu0 0.0
    %1147 = vmatpush2.msra.mxu0 0.0
    %1148 = vmatprep.subr.mxu0 0.0
    %1149 = vmatpush2.msra.mxu0 0.0
    %1150 = vmatprep.subr.mxu0 0.0
    %1151 = vmatpush2.msra.mxu0 0.0
    %1152 = vmatprep.subr.mxu0 0.0
    %1153 = vmatpush2.msra.mxu0 0.0
    %1154 = vmatprep.subr.mxu0 0.0
    %1155 = vmatpush2.msra.mxu0 0.0
    %1156 = vmatprep.subr.mxu0 0.0
    %1157 = vmatpush2.msra.mxu0 0.0
    %1158 = vmatprep.subr.mxu0 0.0
    %1159 = vmatpush2.msra.mxu0 0.0
    %1160 = vmatprep.subr.mxu0 0.0
    %1161 = vmatpush2.msra.mxu0 0.0
    %1162 = vmatprep.mubr.f32.mxu0 0.0
    %1163 = vmatmul.mubr.f32.gmra.mxu0 %v1026
    %v1164 = vpop.f32.mrf.mxu0
    %v1165 = vadd.f32 0.0, %v1164
    %v1166 = vpop.f32.mrf.mxu0
    %v1167 = vadd.f32 0.0, %v1166
    %1168 = vdwg.mxu0
    %v1173 = vrot.slane %v1094, 6
    %v1174 = vrot.slane %v1096, 6
    %v1175 = vrot.slane %v1165, 6
    %v1176 = vrot.slane %v1167, 6
    %v1181 = vadd.f32 %v847, %v1173
    %v1182 = vadd.f32 %v848, %v1174
    %v1183 = vadd.f32 %v849, %v1175
    %v1184 = vadd.f32 %v850, %v1176
    %v1185 = vxor.u32 %v1181, 2147483648
    %v1186 = vxor.u32 %v1182, 2147483648
    %v1187 = vxor.u32 %v1183, 2147483648
    %v1188 = vmul.f32 %v1185, 1.442695
    %v1189 = vpow.pop %v1188
    %v1190 = vmul.f32 %v1186, 1.442695
    %v1191 = vpow.pop %v1190
    %v1192 = vmul.f32 %v1187, 1.442695
    %v1193 = vpow.pop %v1192
    %v1194 = vadd.f32 %v1189, 1.0
    %v1195 = vadd.f32 %v1191, 1.0
    %v1196 = vadd.f32 %v1193, 1.0
    %v1197 = vrcp.pop %v1194
    %v1198 = vmul.f32 1.0, %v1197
    %v1199 = vrcp.pop %v1195
    %v1200 = vmul.f32 1.0, %v1199
    %v1201 = vrcp.pop %v1196
    %v1202 = vmul.f32 1.0, %v1201
    %v1203 = vtanh.pop %v1184
    %v1205 = vrot.slane %v1024, 6
    %v1207 = vmul.f32 %v1200, %v1205
    %v1208 = vmul.f32 %v1198, %v1203
    %v1209 = vadd.f32 %v1207, %v1208
    %v1210 = vtanh.pop %v1209
    %v1211 = vmul.f32 %v1202, %v1210
    %v1213 = vrot.slane %v1211, 2
    %1215 = vmatprep.subr.mxu0 %v106
    %1216 = vmatpush1.msra.mxu0 %v105
    %1217 = vmatprep.subr.mxu0 %v102
    %1218 = vmatpush1.msra.mxu0 %v101
    %1219 = vmatprep.subr.mxu0 %v98
    %1220 = vmatpush1.msra.mxu0 %v97
    %1221 = vmatprep.subr.mxu0 %v94
    %1222 = vmatpush1.msra.mxu0 %v93
    %1223 = vmatprep.subr.mxu0 %v90
    %1224 = vmatpush1.msra.mxu0 %v89
    %1225 = vmatprep.subr.mxu0 %v86
    %1226 = vmatpush1.msra.mxu0 %v85
    %1227 = vmatprep.subr.mxu0 %v82
    %1228 = vmatpush1.msra.mxu0 %v81
    %1229 = vmatprep.subr.mxu0 %v78
    %1230 = vmatpush1.msra.mxu0 %v77
    %1231 = vmatprep.subr.mxu0 %v74
    %1232 = vmatpush1.msra.mxu0 %v73
    %1233 = vmatprep.subr.mxu0 %v70
    %1234 = vmatpush1.msra.mxu0 %v69
    %1235 = vmatprep.subr.mxu0 %v66
    %1236 = vmatpush1.msra.mxu0 %v65
    %1237 = vmatprep.subr.mxu0 %v62
    %1238 = vmatpush1.msra.mxu0 %v61
    %1239 = vmatprep.subr.mxu0 %v58
    %1240 = vmatpush1.msra.mxu0 %v57
    %1241 = vmatprep.subr.mxu0 %v54
    %1242 = vmatpush1.msra.mxu0 %v53
    %1243 = vmatprep.subr.mxu0 %v50
    %1244 = vmatpush1.msra.mxu0 %v49
    %1245 = vmatprep.subr.mxu0 %v46
    %1246 = vmatpush1.msra.mxu0 %v45
    %1247 = vmatprep.subr.mxu0 0.0
    %1248 = vmatpush2.msra.mxu0 0.0
    %1249 = vmatprep.subr.mxu0 0.0
    %1250 = vmatpush2.msra.mxu0 0.0
    %1251 = vmatprep.subr.mxu0 0.0
    %1252 = vmatpush2.msra.mxu0 0.0
    %1253 = vmatprep.subr.mxu0 0.0
    %1254 = vmatpush2.msra.mxu0 0.0
    %1255 = vmatprep.subr.mxu0 0.0
    %1256 = vmatpush2.msra.mxu0 0.0
    %1257 = vmatprep.subr.mxu0 0.0
    %1258 = vmatpush2.msra.mxu0 0.0
    %1259 = vmatprep.subr.mxu0 0.0
    %1260 = vmatpush2.msra.mxu0 0.0
    %1261 = vmatprep.subr.mxu0 0.0
    %1262 = vmatpush2.msra.mxu0 0.0
    %1263 = vmatprep.subr.mxu0 0.0
    %1264 = vmatpush2.msra.mxu0 0.0
    %1265 = vmatprep.subr.mxu0 0.0
    %1266 = vmatpush2.msra.mxu0 0.0
    %1267 = vmatprep.subr.mxu0 0.0
    %1268 = vmatpush2.msra.mxu0 0.0
    %1269 = vmatprep.subr.mxu0 0.0
    %1270 = vmatpush2.msra.mxu0 0.0
    %1271 = vmatprep.subr.mxu0 0.0
    %1272 = vmatpush2.msra.mxu0 0.0
    %1273 = vmatprep.subr.mxu0 0.0
    %1274 = vmatpush2.msra.mxu0 0.0
    %1275 = vmatprep.subr.mxu0 0.0
    %1276 = vmatpush2.msra.mxu0 0.0
    %1277 = vmatprep.subr.mxu0 0.0
    %1278 = vmatpush2.msra.mxu0 0.0
    %1279 = vmatprep.mubr.f32.mxu0 0.0
    %1280 = vmatmul.mubr.f32.gmra.mxu0 %v1213
    %v1281 = vpop.f32.mrf.mxu0
    %v1282 = vadd.f32 0.0, %v1281
    %v1283 = vpop.f32.mrf.mxu0
    %v1284 = vadd.f32 0.0, %v1283
    %1285 = vdwg.mxu0
    %1286 = vmatprep.subr.mxu0 %v108
    %1287 = vmatpush1.msra.mxu0 %v107
    %1288 = vmatprep.subr.mxu0 %v104
    %1289 = vmatpush1.msra.mxu0 %v103
    %1290 = vmatprep.subr.mxu0 %v100
    %1291 = vmatpush1.msra.mxu0 %v99
    %1292 = vmatprep.subr.mxu0 %v96
    %1293 = vmatpush1.msra.mxu0 %v95
    %1294 = vmatprep.subr.mxu0 %v92
    %1295 = vmatpush1.msra.mxu0 %v91
    %1296 = vmatprep.subr.mxu0 %v88
    %1297 = vmatpush1.msra.mxu0 %v87
    %1298 = vmatprep.subr.mxu0 %v84
    %1299 = vmatpush1.msra.mxu0 %v83
    %1300 = vmatprep.subr.mxu0 %v80
    %1301 = vmatpush1.msra.mxu0 %v79
    %1302 = vmatprep.subr.mxu0 %v76
    %1303 = vmatpush1.msra.mxu0 %v75
    %1304 = vmatprep.subr.mxu0 %v72
    %1305 = vmatpush1.msra.mxu0 %v71
    %1306 = vmatprep.subr.mxu0 %v68
    %1307 = vmatpush1.msra.mxu0 %v67
    %1308 = vmatprep.subr.mxu0 %v64
    %1309 = vmatpush1.msra.mxu0 %v63
    %1310 = vmatprep.subr.mxu0 %v60
    %1311 = vmatpush1.msra.mxu0 %v59
    %1312 = vmatprep.subr.mxu0 %v56
    %1313 = vmatpush1.msra.mxu0 %v55
    %1314 = vmatprep.subr.mxu0 %v52
    %1315 = vmatpush1.msra.mxu0 %v51
    %1316 = vmatprep.subr.mxu0 %v48
    %1317 = vmatpush1.msra.mxu0 %v47
    %1318 = vmatprep.subr.mxu0 0.0
    %1319 = vmatpush2.msra.mxu0 0.0
    %1320 = vmatprep.subr.mxu0 0.0
    %1321 = vmatpush2.msra.mxu0 0.0
    %1322 = vmatprep.subr.mxu0 0.0
    %1323 = vmatpush2.msra.mxu0 0.0
    %1324 = vmatprep.subr.mxu0 0.0
    %1325 = vmatpush2.msra.mxu0 0.0
    %1326 = vmatprep.subr.mxu0 0.0
    %1327 = vmatpush2.msra.mxu0 0.0
    %1328 = vmatprep.subr.mxu0 0.0
    %1329 = vmatpush2.msra.mxu0 0.0
    %1330 = vmatprep.subr.mxu0 0.0
    %1331 = vmatpush2.msra.mxu0 0.0
    %1332 = vmatprep.subr.mxu0 0.0
    %1333 = vmatpush2.msra.mxu0 0.0
    %1334 = vmatprep.subr.mxu0 0.0
    %1335 = vmatpush2.msra.mxu0 0.0
    %1336 = vmatprep.subr.mxu0 0.0
    %1337 = vmatpush2.msra.mxu0 0.0
    %1338 = vmatprep.subr.mxu0 0.0
    %1339 = vmatpush2.msra.mxu0 0.0
    %1340 = vmatprep.subr.mxu0 0.0
    %1341 = vmatpush2.msra.mxu0 0.0
    %1342 = vmatprep.subr.mxu0 0.0
    %1343 = vmatpush2.msra.mxu0 0.0
    %1344 = vmatprep.subr.mxu0 0.0
    %1345 = vmatpush2.msra.mxu0 0.0
    %1346 = vmatprep.subr.mxu0 0.0
    %1347 = vmatpush2.msra.mxu0 0.0
    %1348 = vmatprep.subr.mxu0 0.0
    %1349 = vmatpush2.msra.mxu0 0.0
    %1350 = vmatprep.mubr.f32.mxu0 0.0
    %1351 = vmatmul.mubr.f32.gmra.mxu0 %v1213
    %v1352 = vpop.f32.mrf.mxu0
    %v1353 = vadd.f32 0.0, %v1352
    %v1354 = vpop.f32.mrf.mxu0
    %v1355 = vadd.f32 0.0, %v1354
    %1356 = vdwg.mxu0
    %v1361 = vrot.slane %v1282, 4
    %v1362 = vrot.slane %v1284, 4
    %v1363 = vrot.slane %v1353, 4
    %v1364 = vrot.slane %v1355, 4
    %v1369 = vadd.f32 %v847, %v1361
    %v1370 = vadd.f32 %v848, %v1362
    %v1371 = vadd.f32 %v849, %v1363
    %v1372 = vadd.f32 %v850, %v1364
    %v1373 = vxor.u32 %v1369, 2147483648
    %v1374 = vxor.u32 %v1370, 2147483648
    %v1375 = vxor.u32 %v1371, 2147483648
    %v1376 = vmul.f32 %v1373, 1.442695
    %v1377 = vpow.pop %v1376
    %v1378 = vmul.f32 %v1374, 1.442695
    %v1379 = vpow.pop %v1378
    %v1380 = vmul.f32 %v1375, 1.442695
    %v1381 = vpow.pop %v1380
    %v1382 = vadd.f32 %v1377, 1.0
    %v1383 = vadd.f32 %v1379, 1.0
    %v1384 = vadd.f32 %v1381, 1.0
    %v1385 = vrcp.pop %v1382
    %v1386 = vmul.f32 1.0, %v1385
    %v1387 = vrcp.pop %v1383
    %v1388 = vmul.f32 1.0, %v1387
    %v1389 = vrcp.pop %v1384
    %v1390 = vmul.f32 1.0, %v1389
    %v1391 = vtanh.pop %v1372
    %v1393 = vrot.slane %v1209, 6
    %v1395 = vmul.f32 %v1388, %v1393
    %v1396 = vmul.f32 %v1386, %v1391
    %v1397 = vadd.f32 %v1395, %v1396
    %v1398 = vtanh.pop %v1397
    %v1399 = vmul.f32 %v1390, %v1398
    %v1401 = vrot.slane %v1399, 4
    %1403 = vmatprep.subr.mxu0 %v106
    %1404 = vmatpush1.msra.mxu0 %v105
    %1405 = vmatprep.subr.mxu0 %v102
    %1406 = vmatpush1.msra.mxu0 %v101
    %1407 = vmatprep.subr.mxu0 %v98
    %1408 = vmatpush1.msra.mxu0 %v97
    %1409 = vmatprep.subr.mxu0 %v94
    %1410 = vmatpush1.msra.mxu0 %v93
    %1411 = vmatprep.subr.mxu0 %v90
    %1412 = vmatpush1.msra.mxu0 %v89
    %1413 = vmatprep.subr.mxu0 %v86
    %1414 = vmatpush1.msra.mxu0 %v85
    %1415 = vmatprep.subr.mxu0 %v82
    %1416 = vmatpush1.msra.mxu0 %v81
    %1417 = vmatprep.subr.mxu0 %v78
    %1418 = vmatpush1.msra.mxu0 %v77
    %1419 = vmatprep.subr.mxu0 %v74
    %1420 = vmatpush1.msra.mxu0 %v73
    %1421 = vmatprep.subr.mxu0 %v70
    %1422 = vmatpush1.msra.mxu0 %v69
    %1423 = vmatprep.subr.mxu0 %v66
    %1424 = vmatpush1.msra.mxu0 %v65
    %1425 = vmatprep.subr.mxu0 %v62
    %1426 = vmatpush1.msra.mxu0 %v61
    %1427 = vmatprep.subr.mxu0 %v58
    %1428 = vmatpush1.msra.mxu0 %v57
    %1429 = vmatprep.subr.mxu0 %v54
    %1430 = vmatpush1.msra.mxu0 %v53
    %1431 = vmatprep.subr.mxu0 %v50
    %1432 = vmatpush1.msra.mxu0 %v49
    %1433 = vmatprep.subr.mxu0 %v46
    %1434 = vmatpush1.msra.mxu0 %v45
    %1435 = vmatprep.subr.mxu0 0.0
    %1436 = vmatpush2.msra.mxu0 0.0
    %1437 = vmatprep.subr.mxu0 0.0
    %1438 = vmatpush2.msra.mxu0 0.0
    %1439 = vmatprep.subr.mxu0 0.0
    %1440 = vmatpush2.msra.mxu0 0.0
    %1441 = vmatprep.subr.mxu0 0.0
    %1442 = vmatpush2.msra.mxu0 0.0
    %1443 = vmatprep.subr.mxu0 0.0
    %1444 = vmatpush2.msra.mxu0 0.0
    %1445 = vmatprep.subr.mxu0 0.0
    %1446 = vmatpush2.msra.mxu0 0.0
    %1447 = vmatprep.subr.mxu0 0.0
    %1448 = vmatpush2.msra.mxu0 0.0
    %1449 = vmatprep.subr.mxu0 0.0
    %1450 = vmatpush2.msra.mxu0 0.0
    %1451 = vmatprep.subr.mxu0 0.0
    %1452 = vmatpush2.msra.mxu0 0.0
    %1453 = vmatprep.subr.mxu0 0.0
    %1454 = vmatpush2.msra.mxu0 0.0
    %1455 = vmatprep.subr.mxu0 0.0
    %1456 = vmatpush2.msra.mxu0 0.0
    %1457 = vmatprep.subr.mxu0 0.0
    %1458 = vmatpush2.msra.mxu0 0.0
    %1459 = vmatprep.subr.mxu0 0.0
    %1460 = vmatpush2.msra.mxu0 0.0
    %1461 = vmatprep.subr.mxu0 0.0
    %1462 = vmatpush2.msra.mxu0 0.0
    %1463 = vmatprep.subr.mxu0 0.0
    %1464 = vmatpush2.msra.mxu0 0.0
    %1465 = vmatprep.subr.mxu0 0.0
    %1466 = vmatpush2.msra.mxu0 0.0
    %1467 = vmatprep.mubr.f32.mxu0 0.0
    %1468 = vmatmul.mubr.f32.gmra.mxu0 %v1401
    %v1469 = vpop.f32.mrf.mxu0
    %v1470 = vadd.f32 0.0, %v1469
    %v1471 = vpop.f32.mrf.mxu0
    %v1472 = vadd.f32 0.0, %v1471
    %1473 = vdwg.mxu0
    %1474 = vmatprep.subr.mxu0 %v108
    %1475 = vmatpush1.msra.mxu0 %v107
    %1476 = vmatprep.subr.mxu0 %v104
    %1477 = vmatpush1.msra.mxu0 %v103
    %1478 = vmatprep.subr.mxu0 %v100
    %1479 = vmatpush1.msra.mxu0 %v99
    %1480 = vmatprep.subr.mxu0 %v96
    %1481 = vmatpush1.msra.mxu0 %v95
    %1482 = vmatprep.subr.mxu0 %v92
    %1483 = vmatpush1.msra.mxu0 %v91
    %1484 = vmatprep.subr.mxu0 %v88
    %1485 = vmatpush1.msra.mxu0 %v87
    %1486 = vmatprep.subr.mxu0 %v84
    %1487 = vmatpush1.msra.mxu0 %v83
    %1488 = vmatprep.subr.mxu0 %v80
    %1489 = vmatpush1.msra.mxu0 %v79
    %1490 = vmatprep.subr.mxu0 %v76
    %1491 = vmatpush1.msra.mxu0 %v75
    %1492 = vmatprep.subr.mxu0 %v72
    %1493 = vmatpush1.msra.mxu0 %v71
    %1494 = vmatprep.subr.mxu0 %v68
    %1495 = vmatpush1.msra.mxu0 %v67
    %1496 = vmatprep.subr.mxu0 %v64
    %1497 = vmatpush1.msra.mxu0 %v63
    %1498 = vmatprep.subr.mxu0 %v60
    %1499 = vmatpush1.msra.mxu0 %v59
    %1500 = vmatprep.subr.mxu0 %v56
    %1501 = vmatpush1.msra.mxu0 %v55
    %1502 = vmatprep.subr.mxu0 %v52
    %1503 = vmatpush1.msra.mxu0 %v51
    %1504 = vmatprep.subr.mxu0 %v48
    %1505 = vmatpush1.msra.mxu0 %v47
    %1506 = vmatprep.subr.mxu0 0.0
    %1507 = vmatpush2.msra.mxu0 0.0
    %1508 = vmatprep.subr.mxu0 0.0
    %1509 = vmatpush2.msra.mxu0 0.0
    %1510 = vmatprep.subr.mxu0 0.0
    %1511 = vmatpush2.msra.mxu0 0.0
    %1512 = vmatprep.subr.mxu0 0.0
    %1513 = vmatpush2.msra.mxu0 0.0
    %1514 = vmatprep.subr.mxu0 0.0
    %1515 = vmatpush2.msra.mxu0 0.0
    %1516 = vmatprep.subr.mxu0 0.0
    %1517 = vmatpush2.msra.mxu0 0.0
    %1518 = vmatprep.subr.mxu0 0.0
    %1519 = vmatpush2.msra.mxu0 0.0
    %1520 = vmatprep.subr.mxu0 0.0
    %1521 = vmatpush2.msra.mxu0 0.0
    %1522 = vmatprep.subr.mxu0 0.0
    %1523 = vmatpush2.msra.mxu0 0.0
    %1524 = vmatprep.subr.mxu0 0.0
    %1525 = vmatpush2.msra.mxu0 0.0
    %1526 = vmatprep.subr.mxu0 0.0
    %1527 = vmatpush2.msra.mxu0 0.0
    %1528 = vmatprep.subr.mxu0 0.0
    %1529 = vmatpush2.msra.mxu0 0.0
    %1530 = vmatprep.subr.mxu0 0.0
    %1531 = vmatpush2.msra.mxu0 0.0
    %1532 = vmatprep.subr.mxu0 0.0
    %1533 = vmatpush2.msra.mxu0 0.0
    %1534 = vmatprep.subr.mxu0 0.0
    %1535 = vmatpush2.msra.mxu0 0.0
    %1536 = vmatprep.subr.mxu0 0.0
    %1537 = vmatpush2.msra.mxu0 0.0
    %1538 = vmatprep.mubr.f32.mxu0 0.0
    %1539 = vmatmul.mubr.f32.gmra.mxu0 %v1401
    %v1540 = vpop.f32.mrf.mxu0
    %v1541 = vadd.f32 0.0, %v1540
    %v1542 = vpop.f32.mrf.mxu0
    %v1543 = vadd.f32 0.0, %v1542
    %1544 = vdwg.mxu0
    %v1549 = vrot.slane %v1470, 2
    %v1550 = vrot.slane %v1472, 2
    %v1551 = vrot.slane %v1541, 2
    %v1552 = vrot.slane %v1543, 2
    %v1557 = vadd.f32 %v847, %v1549
    %v1558 = vadd.f32 %v848, %v1550
    %v1559 = vadd.f32 %v849, %v1551
    %v1560 = vadd.f32 %v850, %v1552
    %v1561 = vxor.u32 %v1557, 2147483648
    %v1562 = vxor.u32 %v1558, 2147483648
    %v1563 = vxor.u32 %v1559, 2147483648
    %v1564 = vmul.f32 %v1561, 1.442695
    %v1565 = vpow.pop %v1564
    %v1566 = vmul.f32 %v1562, 1.442695
    %v1567 = vpow.pop %v1566
    %v1568 = vmul.f32 %v1563, 1.442695
    %v1569 = vpow.pop %v1568
    %v1570 = vadd.f32 %v1565, 1.0
    %v1571 = vadd.f32 %v1567, 1.0
    %v1572 = vadd.f32 %v1569, 1.0
    %v1573 = vrcp.pop %v1570
    %v1574 = vmul.f32 1.0, %v1573
    %v1575 = vrcp.pop %v1571
    %v1576 = vmul.f32 1.0, %v1575
    %v1577 = vrcp.pop %v1572
    %v1578 = vmul.f32 1.0, %v1577
    %v1579 = vtanh.pop %v1560
    %v1581 = vrot.slane %v1397, 6
    %v1583 = vmul.f32 %v1576, %v1581
    %v1584 = vmul.f32 %v1574, %v1579
    %v1585 = vadd.f32 %v1583, %v1584
    %v1586 = vtanh.pop %v1585
    %v1587 = vmul.f32 %v1578, %v1586
    %1588 = vst [vmem:[#allocation3 - $0x6] sm:$0xc0] %v1587
    %1589 = vst [vmem:[#allocation4 - $0x6] sm:$0xc0] %v1585
    // Predicated region
    $region18: #{tpu_custom_call.1} parent=1 // pred_check
      %p1590 = pneg %p24
    $region19: #{tpu_custom_call.1} parent=1 // pred_check_branch
      %1592 = sbr.rel (%p1590) target = $region21
    $region20: #{tpu_custom_call.1} parent=1 // pred_region
      %v1593 = vld [vmem:[#allocation3] sm:$0x3]
      %1594 = vst [vmem:[#allocation9] sm:$0x3] %v1593
    $region21: #{tpu_custom_call.1} parent=1 // pred_fallthru
      _
    // Predicated region
    $region22: #{tpu_custom_call.1} parent=1 // pred_check
      _
    $region23: #{tpu_custom_call.1} parent=1 // pred_check_branch
      %1596 = sbr.rel (0) target = $region25
    $region24: #{tpu_custom_call.1} parent=1 // pred_region
      %s1598 = ssub.s32 32, 32
      %1599 = vsyncadd [#allocation8], %s1598
      %s1601 = sshll.u32 [#allocation9], 4
      %s1602 = int_to_ptr.vmem [resolvable:$true] %s1601
      %1604 = dma.vmem_to_hbm [thread:$0]  %s1602, 32, %s2, [#allocation8]
    $region25: #{tpu_custom_call.1} parent=1 // pred_fallthru
      _
    // Predicated region
    $region26: #{tpu_custom_call.1} parent=1 // pred_check
      _
    $region27: #{tpu_custom_call.1} parent=1 // pred_check_branch
      %1606 = sbr.rel (0) target = $region29
    $region28: #{tpu_custom_call.1} parent=1 // pred_region
      %1607 = dma.done [#allocation8], 32
    $region29: #{tpu_custom_call.1} parent=1 // pred_fallthru
      _
    %1608 = vsyncpa [#allocation7], 1
    %1609 = vsyncpa [#allocation8], 1
  %1610 = vsyncmov [#allocation5]
  %s1611 = vpop.sfrf %1610
  %p1612 = scmp.eq.s32.totalorder %s1611, 0
  %p1613 = pneg %p1612
  %1615 = shalt.err (%p1613)

</llo_original>
